<compile_context>
chip_gen: v7x
topology: tpu7x:2x2x1
jax: 0.10.0
libtpu: 0.0.40
codegen_flags: <defaults>
</compile_context>

<pallas_src>
import functools

import jax
import jax.numpy as jnp
from jax import lax
from jax.experimental import pallas as pl
from jax.experimental.pallas import tpu as pltpu


def _upsample_conv_kernel(body_ref, halo0_ref, halo1_ref, w_ref, b_ref, out_ref,
                          *, TR, W, C):
    """One (batch, row-tile) grid step.

    body_ref : (1, TR, W+2, C)      zero-padded input rows [r*TR, r*TR+TR)
    halo0_ref: (1, 1,  W+2, C)      padded input row  r*TR+TR
    halo1_ref: (1, 1,  W+2, C)      padded input row  r*TR+TR+1
    w_ref    : (2, 2, 3, C, 2C)     folded weights indexed [a, u, dw]
    b_ref    : (1, 2C)              bias tiled over (b-phase, channel)
    out_ref  : (1, TR, 2, W, 2C)    out[0, i, a, j, b*C+c] = y[2i+a, 2j+b, c]
    """
    # Halo'd input slab for this row tile: (TR+2, W+2, C).
    slab = jnp.concatenate([body_ref[0], halo0_ref[0], halo1_ref[0]], axis=0)

    # Hoist the 9 unique shifted windows once; reused by all output phases.
    patches = [[slab[dh:dh + TR, dw:dw + W, :].reshape(TR * W, C)
                for dw in range(3)]
               for dh in range(3)]

    bias = b_ref[...].astype(jnp.float32)                    # (1, 2C)

    for a in range(2):                                       # output-row phase
        acc = None
        for u in range(2):                                   # vertical tap
            for dw in range(3):                              # horizontal shift
                part = jnp.dot(patches[a + u][dw], w_ref[a, u, dw],
                               preferred_element_type=jnp.float32)
                acc = part if acc is None else acc + part
        acc = acc + bias                                     # (TR*W, 2C) fp32
        out_ref[0, :, a, :, :] = acc.reshape(TR, W, 2 * C).astype(out_ref.dtype)


def _vmem_estimate_bytes(tr, W, C, itemsize):
    """Rough per-step VMEM footprint (lane-padded), used to size the row tile."""
    lane = 128
    c_pad = -(-C // lane) * lane
    c2_pad = -(-2 * C // lane) * lane
    inp = (tr + 2) * (W + 2) * c_pad * itemsize       # input body + halo rows
    outb = tr * 2 * W * c2_pad * itemsize             # output block
    patches = 9 * tr * W * c_pad * itemsize           # hoisted windows
    accs = 2 * tr * W * c2_pad * 4                    # fp32 accumulators
    wts = 12 * C * c2_pad * itemsize + c2_pad * itemsize
    return 2 * (inp + outb) + patches + accs + wts    # x2: double buffering


def _pick_row_tile(H, W, C, itemsize, budget_bytes=6 << 20):
    """Largest divisor of H that fits the VMEM budget, capped so the grid has
    several steps (pipelining + v7x 2-TC sharding)."""
    cap = H if H <= 8 else max(8, H // 4)
    best = 1
    for d in range(1, H + 1):
        if H % d or d > cap:
            continue
        if _vmem_estimate_bytes(d, W, C, itemsize) <= budget_bytes:
            best = d
    return best


def upsample_forward(x_nchw, w_hwio, bias):
    """Equivalent of UpSample.forward: F.interpolate(x, 2, 'nearest') -> Conv2d 3x3 pad 1."""
    N, C, H, W = x_nchw.shape
    x = jnp.transpose(x_nchw, (0, 2, 3, 1))              # NHWC
    xp = jnp.pad(x, ((0, 0), (1, 1), (1, 1), (0, 0)))    # (N, H+2, W+2, C)

    # Fold nearest 2x upsample into the 3x3 taps.  A[a, u, h] selects/sums taps.
    A = jnp.array([[[1., 0., 0.],
                    [0., 1., 1.]],
                   [[1., 1., 0.],
                    [0., 0., 1.]]], dtype=w_hwio.dtype)   # (2, 2, 3)
    weff = jnp.einsum('auh,bvw,hwio->abuvio', A, A, w_hwio)   # (2,2,2,2,C,C)

    # Re-pack as per-(a, u, dw) weights with 2C-wide output columns (b, cout);
    # taps unused by a given b-phase are zero.  Built once at trace time.
    wy = jnp.zeros((2, 2, 3, C, 2, C), w_hwio.dtype)      # [a, u, dw, ci, b, co]
    for a in range(2):
        for u in range(2):
            for b in range(2):
                for v in range(2):
                    wy = wy.at[a, u, b + v, :, b, :].set(weff[a, b, u, v])
    w_stack = wy.reshape(2, 2, 3, C, 2 * C)
    b2 = jnp.concatenate([bias, bias]).reshape(1, 2 * C)

    TR = _pick_row_tile(H, W, C, x.dtype.itemsize)
    R = H // TR

    kernel = functools.partial(_upsample_conv_kernel, TR=TR, W=W, C=C)
    out = pl.pallas_call(
        kernel,
        out_shape=jax.ShapeDtypeStruct((N, H, 2, W, 2 * C), x.dtype),
        grid_spec=pltpu.PrefetchScalarGridSpec(
            num_scalar_prefetch=0,
            grid=(N, R),
            in_specs=[
                # Body rows of the row tile.
                pl.BlockSpec((1, TR, W + 2, C), lambda n, r: (n, r, 0, 0)),
                # Two halo rows below the tile (block size 1 => element index).
                pl.BlockSpec((1, 1, W + 2, C),
                             lambda n, r: (n, r * TR + TR, 0, 0)),
                pl.BlockSpec((1, 1, W + 2, C),
                             lambda n, r: (n, r * TR + TR + 1, 0, 0)),
                # Folded weights / bias: constant block, fetched once.
                pl.BlockSpec((2, 2, 3, C, 2 * C),
                             lambda n, r: (0, 0, 0, 0, 0)),
                pl.BlockSpec((1, 2 * C), lambda n, r: (0, 0)),
            ],
            out_specs=pl.BlockSpec((1, TR, 2, W, 2 * C),
                                   lambda n, r: (n, r, 0, 0, 0)),
        ),
        compiler_params=pltpu.CompilerParams(
            dimension_semantics=("parallel", "parallel"),
            vmem_limit_bytes=32 * 1024 * 1024),
    )(xp, xp, xp, w_stack, b2)

    # (N, H, 2, W, 2, C) flattens exactly to (N, 2H, 2W, C): free reshape.
    out = out.reshape(N, 2 * H, 2 * W, C)
    return jnp.transpose(out, (0, 3, 1, 2))               # back to NCHW


def upsample_reference(x_nchw, w_hwio, bias):
    """Plain-JAX reference: explicit nearest upsample + conv (matches PyTorch)."""
    up = jnp.repeat(jnp.repeat(x_nchw, 2, axis=2), 2, axis=3)
    w_oihw = jnp.transpose(w_hwio, (3, 2, 0, 1))
    out = lax.conv_general_dilated(
        up, w_oihw, window_strides=(1, 1), padding=((1, 1), (1, 1)),
        dimension_numbers=('NCHW', 'OIHW', 'NCHW'))
    return out + bias[None, :, None, None]


if __name__ == "__main__":
    key = jax.random.PRNGKey(0)
    k1, k2, k3 = jax.random.split(key, 3)

    N, C, H, W = 2, 8, 16, 16
    x = jax.random.normal(k1, (N, C, H, W), jnp.float32)

    # nn.Conv2d(C, C, 3, padding=1): weight (C, C, 3, 3), bias (C,).
    # Deterministic synthetic init (uniform in +/- 1/sqrt(fan_in), like PyTorch).
    fan_in = C * 3 * 3
    bound = 1.0 / (fan_in ** 0.5)
    w_hwio = jax.random.uniform(k2, (3, 3, C, C), jnp.float32, -bound, bound)
    bias = jax.random.uniform(k3, (C,), jnp.float32, -bound, bound)

    out = upsample_forward(x, w_hwio, bias)
    out = jax.block_until_ready(out)

    ref = upsample_reference(x, w_hwio, bias)
    assert out.shape == (N, C, 2 * H, 2 * W), out.shape
    assert jnp.allclose(out, ref, atol=1e-4, rtol=1e-4), float(
        jnp.max(jnp.abs(out - ref)))
    print("KERNEL_OK")
</pallas_src>

<mosaic_0001>
module attributes {stable_mosaic.version = 11 : i64} {
  func.func @_upsample_conv_kernel(%arg0: i32, %arg1: i32, %arg2: memref<1x8x18x8xf32, #tpu.memory_space<vmem>>, %arg3: memref<1x1x18x8xf32, #tpu.memory_space<vmem>>, %arg4: memref<1x1x18x8xf32, #tpu.memory_space<vmem>>, %arg5: memref<2x2x3x8x16xf32, #tpu.memory_space<vmem>>, %arg6: memref<1x16xf32, #tpu.memory_space<vmem>>, %arg7: memref<1x8x2x16x16xf32, #tpu.memory_space<vmem>>) attributes {dimension_semantics = [#tpu.dimension_semantics<parallel>, #tpu.dimension_semantics<parallel>], iteration_bounds = array<i64: 2, 2>, scalar_prefetch = 0 : i64, scratch_operands = 0 : i64, tpu.core_type = #tpu.core_type<tc>, window_params = [{transform_indices = @transform_0, window_bounds = array<i64: 1, 8, 18, 8>}, {transform_indices = @transform_1, window_bounds = array<i64: 1, 1, 18, 8>}, {transform_indices = @transform_2, window_bounds = array<i64: 1, 1, 18, 8>}, {pipeline_mode = #tpu.pipeline_mode<synchronous>, transform_indices = @transform_3, window_bounds = array<i64: 2, 2, 3, 8, 16>}, {pipeline_mode = #tpu.pipeline_mode<synchronous>, transform_indices = @transform_4, window_bounds = array<i64: 1, 16>}, {transform_indices = @transform_5, window_bounds = array<i64: 1, 8, 2, 16, 16>}]} {
    %c0 = arith.constant 0 : index
    %c0_0 = arith.constant 0 : index
    %c0_1 = arith.constant 0 : index
    %c0_2 = arith.constant 0 : index
    %0 = vector.load %arg2[%c0, %c0_0, %c0_1, %c0_2] : memref<1x8x18x8xf32, #tpu.memory_space<vmem>>, vector<1x8x18x8xf32>
    %1 = vector.shape_cast %0 : vector<1x8x18x8xf32> to vector<8x18x8xf32>
    %c0_3 = arith.constant 0 : index
    %c0_4 = arith.constant 0 : index
    %c0_5 = arith.constant 0 : index
    %c0_6 = arith.constant 0 : index
    %2 = vector.load %arg3[%c0_3, %c0_4, %c0_5, %c0_6] : memref<1x1x18x8xf32, #tpu.memory_space<vmem>>, vector<1x1x18x8xf32>
    %3 = vector.shape_cast %2 : vector<1x1x18x8xf32> to vector<1x18x8xf32>
    %c0_7 = arith.constant 0 : index
    %c0_8 = arith.constant 0 : index
    %c0_9 = arith.constant 0 : index
    %c0_10 = arith.constant 0 : index
    %4 = vector.load %arg4[%c0_7, %c0_8, %c0_9, %c0_10] : memref<1x1x18x8xf32, #tpu.memory_space<vmem>>, vector<1x1x18x8xf32>
    %5 = vector.shape_cast %4 : vector<1x1x18x8xf32> to vector<1x18x8xf32>
    %6 = tpu.concatenate %1, %3, %5 in 0 : vector<8x18x8xf32>, vector<1x18x8xf32>, vector<1x18x8xf32> -> vector<10x18x8xf32>
    %7 = vector.extract_strided_slice %6 {offsets = [0, 0, 0], sizes = [8, 16, 8], strides = [1, 1, 1]} : vector<10x18x8xf32> to vector<8x16x8xf32>
    %8 = vector.shape_cast %7 : vector<8x16x8xf32> to vector<128x8xf32>
    %9 = vector.extract_strided_slice %6 {offsets = [0, 1, 0], sizes = [8, 16, 8], strides = [1, 1, 1]} : vector<10x18x8xf32> to vector<8x16x8xf32>
    %10 = vector.shape_cast %9 : vector<8x16x8xf32> to vector<128x8xf32>
    %11 = vector.extract_strided_slice %6 {offsets = [0, 2, 0], sizes = [8, 16, 8], strides = [1, 1, 1]} : vector<10x18x8xf32> to vector<8x16x8xf32>
    %12 = vector.shape_cast %11 : vector<8x16x8xf32> to vector<128x8xf32>
    %13 = vector.extract_strided_slice %6 {offsets = [1, 0, 0], sizes = [8, 16, 8], strides = [1, 1, 1]} : vector<10x18x8xf32> to vector<8x16x8xf32>
    %14 = vector.shape_cast %13 : vector<8x16x8xf32> to vector<128x8xf32>
    %15 = vector.extract_strided_slice %6 {offsets = [1, 1, 0], sizes = [8, 16, 8], strides = [1, 1, 1]} : vector<10x18x8xf32> to vector<8x16x8xf32>
    %16 = vector.shape_cast %15 : vector<8x16x8xf32> to vector<128x8xf32>
    %17 = vector.extract_strided_slice %6 {offsets = [1, 2, 0], sizes = [8, 16, 8], strides = [1, 1, 1]} : vector<10x18x8xf32> to vector<8x16x8xf32>
    %18 = vector.shape_cast %17 : vector<8x16x8xf32> to vector<128x8xf32>
    %19 = vector.extract_strided_slice %6 {offsets = [2, 0, 0], sizes = [8, 16, 8], strides = [1, 1, 1]} : vector<10x18x8xf32> to vector<8x16x8xf32>
    %20 = vector.shape_cast %19 : vector<8x16x8xf32> to vector<128x8xf32>
    %21 = vector.extract_strided_slice %6 {offsets = [2, 1, 0], sizes = [8, 16, 8], strides = [1, 1, 1]} : vector<10x18x8xf32> to vector<8x16x8xf32>
    %22 = vector.shape_cast %21 : vector<8x16x8xf32> to vector<128x8xf32>
    %23 = vector.extract_strided_slice %6 {offsets = [2, 2, 0], sizes = [8, 16, 8], strides = [1, 1, 1]} : vector<10x18x8xf32> to vector<8x16x8xf32>
    %24 = vector.shape_cast %23 : vector<8x16x8xf32> to vector<128x8xf32>
    %c0_11 = arith.constant 0 : index
    %c0_12 = arith.constant 0 : index
    %25 = vector.load %arg6[%c0_11, %c0_12] : memref<1x16xf32, #tpu.memory_space<vmem>>, vector<1x16xf32>
    %c0_13 = arith.constant 0 : index
    %c0_14 = arith.constant 0 : index
    %c0_15 = arith.constant 0 : index
    %c0_16 = arith.constant 0 : index
    %c0_17 = arith.constant 0 : index
    %26 = vector.load %arg5[%c0_13, %c0_14, %c0_15, %c0_16, %c0_17] : memref<2x2x3x8x16xf32, #tpu.memory_space<vmem>>, vector<1x1x1x8x16xf32>
    %27 = vector.shape_cast %26 : vector<1x1x1x8x16xf32> to vector<8x16xf32>
    %cst = arith.constant dense<0.000000e+00> : vector<128x16xf32>
    %28 = tpu.matmul %8, %27, %cst {dimension_numbers = #tpu.dot_dimension_numbers<[1], [0], [0], [1], [0, 0, 1, 1], [], []>} : vector<128x8xf32>, vector<8x16xf32>, vector<128x16xf32> -> vector<128x16xf32>
    %c0_18 = arith.constant 0 : index
    %c0_19 = arith.constant 0 : index
    %c1 = arith.constant 1 : index
    %c0_20 = arith.constant 0 : index
    %c0_21 = arith.constant 0 : index
    %29 = vector.load %arg5[%c0_18, %c0_19, %c1, %c0_20, %c0_21] : memref<2x2x3x8x16xf32, #tpu.memory_space<vmem>>, vector<1x1x1x8x16xf32>
    %30 = vector.shape_cast %29 : vector<1x1x1x8x16xf32> to vector<8x16xf32>
    %cst_22 = arith.constant dense<0.000000e+00> : vector<128x16xf32>
    %31 = tpu.matmul %10, %30, %cst_22 {dimension_numbers = #tpu.dot_dimension_numbers<[1], [0], [0], [1], [0, 0, 1, 1], [], []>} : vector<128x8xf32>, vector<8x16xf32>, vector<128x16xf32> -> vector<128x16xf32>
    %32 = arith.addf %28, %31 : vector<128x16xf32>
    %c0_23 = arith.constant 0 : index
    %c0_24 = arith.constant 0 : index
    %c2 = arith.constant 2 : index
    %c0_25 = arith.constant 0 : index
    %c0_26 = arith.constant 0 : index
    %33 = vector.load %arg5[%c0_23, %c0_24, %c2, %c0_25, %c0_26] : memref<2x2x3x8x16xf32, #tpu.memory_space<vmem>>, vector<1x1x1x8x16xf32>
    %34 = vector.shape_cast %33 : vector<1x1x1x8x16xf32> to vector<8x16xf32>
    %cst_27 = arith.constant dense<0.000000e+00> : vector<128x16xf32>
    %35 = tpu.matmul %12, %34, %cst_27 {dimension_numbers = #tpu.dot_dimension_numbers<[1], [0], [0], [1], [0, 0, 1, 1], [], []>} : vector<128x8xf32>, vector<8x16xf32>, vector<128x16xf32> -> vector<128x16xf32>
    %36 = arith.addf %32, %35 : vector<128x16xf32>
    %c0_28 = arith.constant 0 : index
    %c1_29 = arith.constant 1 : index
    %c0_30 = arith.constant 0 : index
    %c0_31 = arith.constant 0 : index
    %c0_32 = arith.constant 0 : index
    %37 = vector.load %arg5[%c0_28, %c1_29, %c0_30, %c0_31, %c0_32] : memref<2x2x3x8x16xf32, #tpu.memory_space<vmem>>, vector<1x1x1x8x16xf32>
    %38 = vector.shape_cast %37 : vector<1x1x1x8x16xf32> to vector<8x16xf32>
    %cst_33 = arith.constant dense<0.000000e+00> : vector<128x16xf32>
    %39 = tpu.matmul %14, %38, %cst_33 {dimension_numbers = #tpu.dot_dimension_numbers<[1], [0], [0], [1], [0, 0, 1, 1], [], []>} : vector<128x8xf32>, vector<8x16xf32>, vector<128x16xf32> -> vector<128x16xf32>
    %40 = arith.addf %36, %39 : vector<128x16xf32>
    %c0_34 = arith.constant 0 : index
    %c1_35 = arith.constant 1 : index
    %c1_36 = arith.constant 1 : index
    %c0_37 = arith.constant 0 : index
    %c0_38 = arith.constant 0 : index
    %41 = vector.load %arg5[%c0_34, %c1_35, %c1_36, %c0_37, %c0_38] : memref<2x2x3x8x16xf32, #tpu.memory_space<vmem>>, vector<1x1x1x8x16xf32>
    %42 = vector.shape_cast %41 : vector<1x1x1x8x16xf32> to vector<8x16xf32>
    %cst_39 = arith.constant dense<0.000000e+00> : vector<128x16xf32>
    %43 = tpu.matmul %16, %42, %cst_39 {dimension_numbers = #tpu.dot_dimension_numbers<[1], [0], [0], [1], [0, 0, 1, 1], [], []>} : vector<128x8xf32>, vector<8x16xf32>, vector<128x16xf32> -> vector<128x16xf32>
    %44 = arith.addf %40, %43 : vector<128x16xf32>
    %c0_40 = arith.constant 0 : index
    %c1_41 = arith.constant 1 : index
    %c2_42 = arith.constant 2 : index
    %c0_43 = arith.constant 0 : index
    %c0_44 = arith.constant 0 : index
    %45 = vector.load %arg5[%c0_40, %c1_41, %c2_42, %c0_43, %c0_44] : memref<2x2x3x8x16xf32, #tpu.memory_space<vmem>>, vector<1x1x1x8x16xf32>
    %46 = vector.shape_cast %45 : vector<1x1x1x8x16xf32> to vector<8x16xf32>
    %cst_45 = arith.constant dense<0.000000e+00> : vector<128x16xf32>
    %47 = tpu.matmul %18, %46, %cst_45 {dimension_numbers = #tpu.dot_dimension_numbers<[1], [0], [0], [1], [0, 0, 1, 1], [], []>} : vector<128x8xf32>, vector<8x16xf32>, vector<128x16xf32> -> vector<128x16xf32>
    %48 = arith.addf %44, %47 : vector<128x16xf32>
    %49 = vector.broadcast %25 : vector<1x16xf32> to vector<128x16xf32>
    %50 = arith.addf %48, %49 : vector<128x16xf32>
    %51 = vector.shape_cast %50 : vector<128x16xf32> to vector<8x16x16xf32>
    %c0_46 = arith.constant 0 : index
    %c0_47 = arith.constant 0 : index
    %c0_48 = arith.constant 0 : index
    %c0_49 = arith.constant 0 : index
    %c0_50 = arith.constant 0 : index
    %52 = vector.load %arg7[%c0_46, %c0_47, %c0_48, %c0_49, %c0_50] : memref<1x8x2x16x16xf32, #tpu.memory_space<vmem>>, vector<1x8x1x16x16xf32>
    %53 = vector.shape_cast %52 : vector<1x8x1x16x16xf32> to vector<8x16x16xf32>
    %54 = vector.shape_cast %51 : vector<8x16x16xf32> to vector<1x8x1x16x16xf32>
    tpu.vector_store %arg7[%c0_46, %c0_47, %c0_48, %c0_49, %c0_50], %54 {strides = array<i32>} : memref<1x8x2x16x16xf32, #tpu.memory_space<vmem>>, vector<1x8x1x16x16xf32>,
    %c1_51 = arith.constant 1 : index
    %c0_52 = arith.constant 0 : index
    %c0_53 = arith.constant 0 : index
    %c0_54 = arith.constant 0 : index
    %c0_55 = arith.constant 0 : index
    %55 = vector.load %arg5[%c1_51, %c0_52, %c0_53, %c0_54, %c0_55] : memref<2x2x3x8x16xf32, #tpu.memory_space<vmem>>, vector<1x1x1x8x16xf32>
    %56 = vector.shape_cast %55 : vector<1x1x1x8x16xf32> to vector<8x16xf32>
    %cst_56 = arith.constant dense<0.000000e+00> : vector<128x16xf32>
    %57 = tpu.matmul %14, %56, %cst_56 {dimension_numbers = #tpu.dot_dimension_numbers<[1], [0], [0], [1], [0, 0, 1, 1], [], []>} : vector<128x8xf32>, vector<8x16xf32>, vector<128x16xf32> -> vector<128x16xf32>
    %c1_57 = arith.constant 1 : index
    %c0_58 = arith.constant 0 : index
    %c1_59 = arith.constant 1 : index
    %c0_60 = arith.constant 0 : index
    %c0_61 = arith.constant 0 : index
    %58 = vector.load %arg5[%c1_57, %c0_58, %c1_59, %c0_60, %c0_61] : memref<2x2x3x8x16xf32, #tpu.memory_space<vmem>>, vector<1x1x1x8x16xf32>
    %59 = vector.shape_cast %58 : vector<1x1x1x8x16xf32> to vector<8x16xf32>
    %cst_62 = arith.constant dense<0.000000e+00> : vector<128x16xf32>
    %60 = tpu.matmul %16, %59, %cst_62 {dimension_numbers = #tpu.dot_dimension_numbers<[1], [0], [0], [1], [0, 0, 1, 1], [], []>} : vector<128x8xf32>, vector<8x16xf32>, vector<128x16xf32> -> vector<128x16xf32>
    %61 = arith.addf %57, %60 : vector<128x16xf32>
    %c1_63 = arith.constant 1 : index
    %c0_64 = arith.constant 0 : index
    %c2_65 = arith.constant 2 : index
    %c0_66 = arith.constant 0 : index
    %c0_67 = arith.constant 0 : index
    %62 = vector.load %arg5[%c1_63, %c0_64, %c2_65, %c0_66, %c0_67] : memref<2x2x3x8x16xf32, #tpu.memory_space<vmem>>, vector<1x1x1x8x16xf32>
    %63 = vector.shape_cast %62 : vector<1x1x1x8x16xf32> to vector<8x16xf32>
    %cst_68 = arith.constant dense<0.000000e+00> : vector<128x16xf32>
    %64 = tpu.matmul %18, %63, %cst_68 {dimension_numbers = #tpu.dot_dimension_numbers<[1], [0], [0], [1], [0, 0, 1, 1], [], []>} : vector<128x8xf32>, vector<8x16xf32>, vector<128x16xf32> -> vector<128x16xf32>
    %65 = arith.addf %61, %64 : vector<128x16xf32>
    %c1_69 = arith.constant 1 : index
    %c1_70 = arith.constant 1 : index
    %c0_71 = arith.constant 0 : index
    %c0_72 = arith.constant 0 : index
    %c0_73 = arith.constant 0 : index
    %66 = vector.load %arg5[%c1_69, %c1_70, %c0_71, %c0_72, %c0_73] : memref<2x2x3x8x16xf32, #tpu.memory_space<vmem>>, vector<1x1x1x8x16xf32>
    %67 = vector.shape_cast %66 : vector<1x1x1x8x16xf32> to vector<8x16xf32>
    %cst_74 = arith.constant dense<0.000000e+00> : vector<128x16xf32>
    %68 = tpu.matmul %20, %67, %cst_74 {dimension_numbers = #tpu.dot_dimension_numbers<[1], [0], [0], [1], [0, 0, 1, 1], [], []>} : vector<128x8xf32>, vector<8x16xf32>, vector<128x16xf32> -> vector<128x16xf32>
    %69 = arith.addf %65, %68 : vector<128x16xf32>
    %c1_75 = arith.constant 1 : index
    %c1_76 = arith.constant 1 : index
    %c1_77 = arith.constant 1 : index
    %c0_78 = arith.constant 0 : index
    %c0_79 = arith.constant 0 : index
    %70 = vector.load %arg5[%c1_75, %c1_76, %c1_77, %c0_78, %c0_79] : memref<2x2x3x8x16xf32, #tpu.memory_space<vmem>>, vector<1x1x1x8x16xf32>
    %71 = vector.shape_cast %70 : vector<1x1x1x8x16xf32> to vector<8x16xf32>
    %cst_80 = arith.constant dense<0.000000e+00> : vector<128x16xf32>
    %72 = tpu.matmul %22, %71, %cst_80 {dimension_numbers = #tpu.dot_dimension_numbers<[1], [0], [0], [1], [0, 0, 1, 1], [], []>} : vector<128x8xf32>, vector<8x16xf32>, vector<128x16xf32> -> vector<128x16xf32>
    %73 = arith.addf %69, %72 : vector<128x16xf32>
    %c1_81 = arith.constant 1 : index
    %c1_82 = arith.constant 1 : index
    %c2_83 = arith.constant 2 : index
    %c0_84 = arith.constant 0 : index
    %c0_85 = arith.constant 0 : index
    %74 = vector.load %arg5[%c1_81, %c1_82, %c2_83, %c0_84, %c0_85] : memref<2x2x3x8x16xf32, #tpu.memory_space<vmem>>, vector<1x1x1x8x16xf32>
    %75 = vector.shape_cast %74 : vector<1x1x1x8x16xf32> to vector<8x16xf32>
    %cst_86 = arith.constant dense<0.000000e+00> : vector<128x16xf32>
    %76 = tpu.matmul %24, %75, %cst_86 {dimension_numbers = #tpu.dot_dimension_numbers<[1], [0], [0], [1], [0, 0, 1, 1], [], []>} : vector<128x8xf32>, vector<8x16xf32>, vector<128x16xf32> -> vector<128x16xf32>
    %77 = arith.addf %73, %76 : vector<128x16xf32>
    %78 = vector.broadcast %25 : vector<1x16xf32> to vector<128x16xf32>
    %79 = arith.addf %77, %78 : vector<128x16xf32>
    %80 = vector.shape_cast %79 : vector<128x16xf32> to vector<8x16x16xf32>
    %c0_87 = arith.constant 0 : index
    %c0_88 = arith.constant 0 : index
    %c1_89 = arith.constant 1 : index
    %c0_90 = arith.constant 0 : index
    %c0_91 = arith.constant 0 : index
    %81 = vector.load %arg7[%c0_87, %c0_88, %c1_89, %c0_90, %c0_91] : memref<1x8x2x16x16xf32, #tpu.memory_space<vmem>>, vector<1x8x1x16x16xf32>
    %82 = vector.shape_cast %81 : vector<1x8x1x16x16xf32> to vector<8x16x16xf32>
    %83 = vector.shape_cast %80 : vector<8x16x16xf32> to vector<1x8x1x16x16xf32>
    tpu.vector_store %arg7[%c0_87, %c0_88, %c1_89, %c0_90, %c0_91], %83 {strides = array<i32>} : memref<1x8x2x16x16xf32, #tpu.memory_space<vmem>>, vector<1x8x1x16x16xf32>,
    return
  }
  func.func @transform_0(%arg0: i32, %arg1: i32) -> (i32, i32, i32, i32) {
    %c0_i32 = arith.constant 0 : i32
    %c0_i32_0 = arith.constant 0 : i32
    %c0_i32_1 = arith.constant 0 : i32
    return %arg0, %arg1, %c0_i32, %c0_i32_0 : i32, i32, i32, i32
  }
  func.func @transform_1(%arg0: i32, %arg1: i32) -> (i32, i32, i32, i32) {
    %c8_i32 = arith.constant 8 : i32
    %0 = arith.muli %arg1, %c8_i32 : i32
    %c8_i32_0 = arith.constant 8 : i32
    %1 = arith.addi %0, %c8_i32_0 : i32
    %c0_i32 = arith.constant 0 : i32
    %c0_i32_1 = arith.constant 0 : i32
    %c0_i32_2 = arith.constant 0 : i32
    return %arg0, %1, %c0_i32, %c0_i32_1 : i32, i32, i32, i32
  }
  func.func @transform_2(%arg0: i32, %arg1: i32) -> (i32, i32, i32, i32) {
    %c8_i32 = arith.constant 8 : i32
    %0 = arith.muli %arg1, %c8_i32 : i32
    %c8_i32_0 = arith.constant 8 : i32
    %1 = arith.addi %0, %c8_i32_0 : i32
    %c1_i32 = arith.constant 1 : i32
    %2 = arith.addi %1, %c1_i32 : i32
    %c0_i32 = arith.constant 0 : i32
    %c0_i32_1 = arith.constant 0 : i32
    %c0_i32_2 = arith.constant 0 : i32
    return %arg0, %2, %c0_i32, %c0_i32_1 : i32, i32, i32, i32
  }
  func.func @transform_3(%arg0: i32, %arg1: i32) -> (i32, i32, i32, i32, i32) {
    %c0_i32 = arith.constant 0 : i32
    %c0_i32_0 = arith.constant 0 : i32
    %c0_i32_1 = arith.constant 0 : i32
    %c0_i32_2 = arith.constant 0 : i32
    %c0_i32_3 = arith.constant 0 : i32
    %c0_i32_4 = arith.constant 0 : i32
    return %c0_i32, %c0_i32_0, %c0_i32_1, %c0_i32_2, %c0_i32_3 : i32, i32, i32, i32, i32
  }
  func.func @transform_4(%arg0: i32, %arg1: i32) -> (i32, i32) {
    %c0_i32 = arith.constant 0 : i32
    %c0_i32_0 = arith.constant 0 : i32
    %c0_i32_1 = arith.constant 0 : i32
    return %c0_i32, %c0_i32_0 : i32, i32
  }
  func.func @transform_5(%arg0: i32, %arg1: i32) -> (i32, i32, i32, i32, i32) {
    %c0_i32 = arith.constant 0 : i32
    %c0_i32_0 = arith.constant 0 : i32
    %c0_i32_1 = arith.constant 0 : i32
    %c0_i32_2 = arith.constant 0 : i32
    return %arg0, %arg1, %c0_i32, %c0_i32_0, %c0_i32_1 : i32, i32, i32, i32, i32
  }
}

</mosaic_0001>

<llo_original>
// kernel: tpu_custom_call.1
$region0: #{tpu_custom_call.1}
  #allocation0 [shape = 'u32[]', space=smem, size = 0x4, offset = 0x4, fixed_abs, tag = 'smem constant byte address 0x4 - core index']
  #allocation1 [shape = 'u32[144,128]{1,0:T(1,128)}', space=vmem, size = 0x12000, scoped, tag = 'internal scratch']
  %s0 = inlined_call_operand.vmem [shape: f32[2,18,18,8], index: 0, kind: input, shape index: {}]
  %s1 = inlined_call_operand.vmem [shape: f32[2,18,18,8], index: 1, kind: input, shape index: {}]
  %s2 = inlined_call_operand.vmem [shape: f32[2,18,18,8], index: 2, kind: input, shape index: {}]
  %s3 = inlined_call_operand.vmem [shape: f32[2,2,3,8,16], index: 3, kind: input, shape index: {}]
  %s4 = inlined_call_operand.vmem [shape: f32[1,16], index: 4, kind: input, shape index: {}]
  %s5 = inlined_call_operand.hbm [shape: f32[2,16,2,16,16], index: 5, kind: output, shape index: {}]
  %s6 = sld [smem:[#allocation0]]
  $region53: #{tpu_custom_call.1} parent=0
    _
  %s8 = ssub.s32 1, %s6
  %s9 = scalar_select 0, %s8, %s6
  $region1: #{tpu_custom_call.1} parent=0
    #allocation2 [shape = 'u8[262144]{0}', space=vmem, size = 0x40000, scoped, tag = 'output window, operand 0']
    #allocation3 [shape = 's32[2]{0}', space=sflag, size = 0x8, scoped, tag = 'scoped memory for tpu_custom_call.1']
    %10 = vsyncpa [#allocation3], 0
    %s11 = scalar_lea.sflag [#allocation3], 1
    %12 = vsyncpa %s11, 0
    loop: start=0, step=1, limit=6
    $region2: #{tpu_custom_call.1} parent=1 // loop_pre_header
      _
    $region3: #{tpu_custom_call.1} parent=1 // loop_header
      %s14 = sphi 0, %s18
      %p15 = scmp.ge.s32.totalorder %s14, 6
      %s21 = sphi 0, %s33
      %s22 = sphi 0, %s29
      %s23 = sphi 0, %s21
      %s24 = sphi 0, %s22
      %s25 = sphi 0, %s23
      %s26 = sphi 0, %s24
      %s38 = sphi 0, %s40
      %s41 = sphi 0, %s38
      %s42 = sphi 0, %s41
      %s58 = sphi 0, %s42
      %s70 = sphi 0, %s72
      %s73 = sphi 0, %s70
      %s74 = sphi 0, %s73
      %s90 = sphi 0, %s74
      %s102 = sphi 0, %s104
      %s105 = sphi 0, %s102
      %s106 = sphi 0, %s105
      %s122 = sphi 0, %s106
      %s126 = sphi 0, %s126
      %s128 = sphi 0, %s126
      %s129 = sphi 0, %s128
      %s143 = sphi 0, %s129
      %s147 = sphi 0, %s147
      %s149 = sphi 0, %s147
      %s150 = sphi 0, %s149
      %s164 = sphi 0, %s150
      %s172 = sphi 0, %s174
      %s175 = sphi 0, %s172
      %s176 = sphi 0, %s175
      %s192 = sphi 0, %s176
    $region4: #{tpu_custom_call.1} parent=1 // loop_header_branch
      %17 = sbr.rel (%p15) target = $region8
    $region5: #{tpu_custom_call.1} parent=1 // loop_body
      %s19 = ssub.s32 %s14, 1
      %s20 = ssub.s32 %s14, 2
      %s27 = sadd.s32 1, %s22
      %p28 = scmp.ge.s32.totalorder %s27, 2
      %s29 = scalar_select %p28, 0, %s27
      %s30 = sadd.s32 1, %s21
      %s31 = scalar_select %p28, %s30, %s21
      %p32 = scmp.ge.s32.totalorder %s31, 2
      %s33 = scalar_select %p32, 0, %s31
      %s34 = ssub.s32 %s21, %s33
      %s35 = ssub.s32 %s22, %s29
      %s36 = sor.u32 %s34, %s35
      %p37 = scmp.eq.s32.totalorder %s36, 0
      %s39 = sadd.s32 %s38, 1
      %s40 = scalar_select %p37, %s38, %s39
      %p43 = pneg %p37
      %p44 = scmp.eq.s32.totalorder %s14, 3
      %p45 = por %p43, %p44
      %p46 = scmp.ne.s32.totalorder %s38, %s41
      %p47 = scmp.eq.s32.totalorder %s14, 0
      %p48 = por %p46, %p47
      %p49 = scmp.ne.s32.totalorder %s38, %s41
      %p50 = scmp.eq.s32.totalorder %s19, 3
      %p51 = por %p49, %p50
      %p52 = scmp.ne.s32.totalorder %s41, %s42
      %p53 = scmp.eq.s32.totalorder %s19, 0
      %p54 = por %p52, %p53
      %p55 = scmp.ne.s32.totalorder %s41, %s42
      %p56 = scmp.eq.s32.totalorder %s20, 3
      %p57 = por %p55, %p56
      %p59 = scmp.ne.s32.totalorder %s42, %s58
      %p60 = scmp.eq.s32.totalorder %s20, 0
      %p61 = por %p59, %p60
      %s62 = smul.u32 %s22, 8
      %s63 = sadd.s32 %s62, 8
      %s64 = smul.u32 %s29, 8
      %s65 = sadd.s32 %s64, 8
      %s66 = ssub.s32 %s21, %s33
      %s67 = ssub.s32 %s63, %s65
      %s68 = sor.u32 %s66, %s67
      %p69 = scmp.eq.s32.totalorder %s68, 0
      %s71 = sadd.s32 %s70, 1
      %s72 = scalar_select %p69, %s70, %s71
      %p75 = pneg %p69
      %p76 = scmp.eq.s32.totalorder %s14, 3
      %p77 = por %p75, %p76
      %p78 = scmp.ne.s32.totalorder %s70, %s73
      %p79 = scmp.eq.s32.totalorder %s14, 0
      %p80 = por %p78, %p79
      %p81 = scmp.ne.s32.totalorder %s70, %s73
      %p82 = scmp.eq.s32.totalorder %s19, 3
      %p83 = por %p81, %p82
      %p84 = scmp.ne.s32.totalorder %s73, %s74
      %p85 = scmp.eq.s32.totalorder %s19, 0
      %p86 = por %p84, %p85
      %p87 = scmp.ne.s32.totalorder %s73, %s74
      %p88 = scmp.eq.s32.totalorder %s20, 3
      %p89 = por %p87, %p88
      %p91 = scmp.ne.s32.totalorder %s74, %s90
      %p92 = scmp.eq.s32.totalorder %s20, 0
      %p93 = por %p91, %p92
      %s94 = smul.u32 %s22, 8
      %s95 = sadd.s32 %s94, 9
      %s96 = smul.u32 %s29, 8
      %s97 = sadd.s32 %s96, 9
      %s98 = ssub.s32 %s21, %s33
      %s99 = ssub.s32 %s95, %s97
      %s100 = sor.u32 %s98, %s99
      %p101 = scmp.eq.s32.totalorder %s100, 0
      %s103 = sadd.s32 %s102, 1
      %s104 = scalar_select %p101, %s102, %s103
      %p107 = pneg %p101
      %p108 = scmp.eq.s32.totalorder %s14, 3
      %p109 = por %p107, %p108
      %p110 = scmp.ne.s32.totalorder %s102, %s105
      %p111 = scmp.eq.s32.totalorder %s14, 0
      %p112 = por %p110, %p111
      %p113 = scmp.ne.s32.totalorder %s102, %s105
      %p114 = scmp.eq.s32.totalorder %s19, 3
      %p115 = por %p113, %p114
      %p116 = scmp.ne.s32.totalorder %s105, %s106
      %p117 = scmp.eq.s32.totalorder %s19, 0
      %p118 = por %p116, %p117
      %p119 = scmp.ne.s32.totalorder %s105, %s106
      %p120 = scmp.eq.s32.totalorder %s20, 3
      %p121 = por %p119, %p120
      %p123 = scmp.ne.s32.totalorder %s106, %s122
      %p124 = scmp.eq.s32.totalorder %s20, 0
      %p125 = por %p123, %p124
      %s127 = sadd.s32 %s126, 1
      %p130 = scmp.eq.s32.totalorder %s14, 3
      %p131 = scmp.ne.s32.totalorder %s126, %s128
      %p132 = scmp.eq.s32.totalorder %s14, 0
      %p133 = por %p131, %p132
      %p134 = scmp.ne.s32.totalorder %s126, %s128
      %p135 = scmp.eq.s32.totalorder %s19, 3
      %p136 = por %p134, %p135
      %p137 = scmp.ne.s32.totalorder %s128, %s129
      %p138 = scmp.eq.s32.totalorder %s19, 0
      %p139 = por %p137, %p138
      %p140 = scmp.ne.s32.totalorder %s128, %s129
      %p141 = scmp.eq.s32.totalorder %s20, 3
      %p142 = por %p140, %p141
      %p144 = scmp.ne.s32.totalorder %s129, %s143
      %p145 = scmp.eq.s32.totalorder %s20, 0
      %p146 = por %p144, %p145
      %s148 = sadd.s32 %s147, 1
      %p151 = scmp.eq.s32.totalorder %s14, 3
      %p152 = scmp.ne.s32.totalorder %s147, %s149
      %p153 = scmp.eq.s32.totalorder %s14, 0
      %p154 = por %p152, %p153
      %p155 = scmp.ne.s32.totalorder %s147, %s149
      %p156 = scmp.eq.s32.totalorder %s19, 3
      %p157 = por %p155, %p156
      %p158 = scmp.ne.s32.totalorder %s149, %s150
      %p159 = scmp.eq.s32.totalorder %s19, 0
      %p160 = por %p158, %p159
      %p161 = scmp.ne.s32.totalorder %s149, %s150
      %p162 = scmp.eq.s32.totalorder %s20, 3
      %p163 = por %p161, %p162
      %p165 = scmp.ne.s32.totalorder %s150, %s164
      %p166 = scmp.eq.s32.totalorder %s20, 0
      %p167 = por %p165, %p166
      %s168 = ssub.s32 %s21, %s33
      %s169 = ssub.s32 %s22, %s29
      %s170 = sor.u32 %s168, %s169
      %p171 = scmp.eq.s32.totalorder %s170, 0
      %s173 = sadd.s32 %s172, 1
      %s174 = scalar_select %p171, %s172, %s173
      %p177 = pneg %p171
      %p178 = scmp.eq.s32.totalorder %s14, 3
      %p179 = por %p177, %p178
      %p180 = scmp.ne.s32.totalorder %s172, %s175
      %p181 = scmp.eq.s32.totalorder %s14, 0
      %p182 = por %p180, %p181
      %p183 = scmp.ne.s32.totalorder %s172, %s175
      %p184 = scmp.eq.s32.totalorder %s19, 3
      %p185 = por %p183, %p184
      %p186 = scmp.ne.s32.totalorder %s175, %s176
      %p187 = scmp.eq.s32.totalorder %s19, 0
      %p188 = por %p186, %p187
      %p189 = scmp.ne.s32.totalorder %s175, %s176
      %p190 = scmp.eq.s32.totalorder %s20, 3
      %p191 = por %p189, %p190
      %p193 = scmp.ne.s32.totalorder %s176, %s192
      %p194 = scmp.eq.s32.totalorder %s20, 0
      %p195 = por %p193, %p194
      %p196 = scmp.le.s32.totalorder 1, %s14
      %p197 = scmp.lt.s32.totalorder %s14, 5
      %p198 = pnand %p196, %p197
      %p199 = pneg %p198
      // Predicated region
      $region9: #{tpu_custom_call.1} parent=5 // pred_check
        _
      $region10: #{tpu_custom_call.1} parent=5 // pred_check_branch
        %201 = sbr.rel (%p198) target = $region12
      $region11: #{tpu_custom_call.1} parent=5 // pred_region
        %s202 = ssub.s32 %s14, 1
        // Predicated region
        $region13: #{tpu_custom_call.1} parent=11 // pred_check
          %p203 = pneg %p139
        $region14: #{tpu_custom_call.1} parent=11 // pred_check_branch
          %205 = sbr.rel (%p203) target = $region16
        $region15: #{tpu_custom_call.1} parent=11 // pred_region
          _
        $region16: #{tpu_custom_call.1} parent=11 // pred_fallthru
          _
        // Predicated region
        $region17: #{tpu_custom_call.1} parent=11 // pred_check
          %p206 = pneg %p160
        $region18: #{tpu_custom_call.1} parent=11 // pred_check_branch
          %208 = sbr.rel (%p206) target = $region20
        $region19: #{tpu_custom_call.1} parent=11 // pred_region
          _
        $region20: #{tpu_custom_call.1} parent=11 // pred_fallthru
          _
      $region12: #{tpu_custom_call.1} parent=5 // pred_fallthru
        _
      %p209 = scmp.lt.s32.totalorder %s14, 4
      // Predicated region
      $region21: #{tpu_custom_call.1} parent=5 // pred_check
        %p210 = pneg %p209
      $region22: #{tpu_custom_call.1} parent=5 // pred_check_branch
        %212 = sbr.rel (%p210) target = $region24
      $region23: #{tpu_custom_call.1} parent=5 // pred_region
        // Predicated region
        $region25: #{tpu_custom_call.1} parent=23 // pred_check
          %p213 = pneg %p48
        $region26: #{tpu_custom_call.1} parent=23 // pred_check_branch
          %215 = sbr.rel (%p213) target = $region28
        $region27: #{tpu_custom_call.1} parent=23 // pred_region
          %s216 = smul.u32 8, %s22
          %s217 = ssub.s32 18, %s216
          %p218 = scmp.lt.s32.totalorder %s217, 8
          %s219 = scalar_select %p218, %s217, 8
          %s220 = smul.u32 128, %s219
          %s221 = smul.u32 %s220, 3
          %p222 = scmp.lt.s32.totalorder %s21, 1
          %s223 = scalar_select %p222, %s21, 1
          %p224 = scmp.lt.s32.totalorder %s216, 17
          %s225 = scalar_select %p224, %s216, 17
          %s226 = smul.addr %s225, 3
          %s227 = smul.addr %s223, 54
          %s228 = sadd.s32 %s226, %s227
          %s229 = smul.addr %s228, 8
          %s230 = scalar_lea.vmem %s0, %s229
          %s231 = smul.u32 8, %s22
          %s232 = ssub.s32 18, %s231
          %p233 = scmp.lt.s32.totalorder %s232, 8
          %s234 = scalar_select %p233, %s232, 8
          %s235 = smul.u32 128, %s234
          %s236 = smul.u32 %s235, 3
        $region28: #{tpu_custom_call.1} parent=23 // pred_fallthru
          _
        // Predicated region
        $region29: #{tpu_custom_call.1} parent=23 // pred_check
          %p237 = pneg %p80
        $region30: #{tpu_custom_call.1} parent=23 // pred_check_branch
          %239 = sbr.rel (%p237) target = $region32
        $region31: #{tpu_custom_call.1} parent=23 // pred_region
          %s240 = smul.u32 %s22, 8
          %s241 = sadd.s32 %s240, 8
          %p242 = scmp.lt.s32.totalorder %s21, 1
          %s243 = scalar_select %p242, %s21, 1
          %p244 = scmp.lt.s32.totalorder %s241, 17
          %s245 = scalar_select %p244, %s241, 17
          %s246 = smul.addr %s245, 3
          %s247 = smul.addr %s243, 54
          %s248 = sadd.s32 %s246, %s247
          %s249 = smul.addr %s248, 8
          %s250 = scalar_lea.vmem %s1, %s249
          %s251 = smul.u32 %s22, 8
          %s252 = sadd.s32 %s251, 8
        $region32: #{tpu_custom_call.1} parent=23 // pred_fallthru
          _
        // Predicated region
        $region33: #{tpu_custom_call.1} parent=23 // pred_check
          %p253 = pneg %p112
        $region34: #{tpu_custom_call.1} parent=23 // pred_check_branch
          %255 = sbr.rel (%p253) target = $region36
        $region35: #{tpu_custom_call.1} parent=23 // pred_region
          %s256 = smul.u32 %s22, 8
          %s257 = sadd.s32 %s256, 9
          %p258 = scmp.lt.s32.totalorder %s21, 1
          %s259 = scalar_select %p258, %s21, 1
          %p260 = scmp.lt.s32.totalorder %s257, 17
          %s261 = scalar_select %p260, %s257, 17
          %s262 = smul.addr %s261, 3
          %s263 = smul.addr %s259, 54
          %s264 = sadd.s32 %s262, %s263
          %s265 = smul.addr %s264, 8
          %s266 = scalar_lea.vmem %s2, %s265
          %s267 = smul.u32 %s22, 8
          %s268 = sadd.s32 %s267, 9
        $region36: #{tpu_custom_call.1} parent=23 // pred_fallthru
          _
      $region24: #{tpu_custom_call.1} parent=5 // pred_fallthru
        _
      %p269 = scmp.le.s32.totalorder 1, %s14
      %p270 = scmp.lt.s32.totalorder %s14, 5
      %p271 = pnand %p269, %p270
      %p272 = pneg %p271
      // Predicated region
      $region37: #{tpu_custom_call.1} parent=5 // pred_check
        _
      $region38: #{tpu_custom_call.1} parent=5 // pred_check_branch
        %274 = sbr.rel (%p271) target = $region40
      $region39: #{tpu_custom_call.1} parent=5 // pred_region
        %s275 = ssub.s32 %s14, 1
        %s276 = smul.u32 8, %s24
        %s277 = ssub.s32 18, %s276
        %p278 = scmp.lt.s32.totalorder %s277, 8
        %s279 = scalar_select %p278, %s277, 8
        %s280 = smul.u32 128, %s279
        %s281 = smul.u32 %s280, 3
        %p282 = scmp.lt.s32.totalorder %s23, 1
        %s283 = scalar_select %p282, %s23, 1
        %p284 = scmp.lt.s32.totalorder %s276, 17
        %s285 = scalar_select %p284, %s276, 17
        %s286 = smul.addr %s285, 3
        %s287 = smul.addr %s283, 54
        %s288 = sadd.s32 %s286, %s287
        %s289 = smul.addr %s288, 8
        %s290 = scalar_lea.vmem %s0, %s289
        %p291 = pneg %p54
        %p292 = pneg %p51
        %s293 = smul.u32 %s24, 8
        %s294 = sadd.s32 %s293, 8
        %p295 = scmp.lt.s32.totalorder %s23, 1
        %s296 = scalar_select %p295, %s23, 1
        %p297 = scmp.lt.s32.totalorder %s294, 17
        %s298 = scalar_select %p297, %s294, 17
        %s299 = smul.addr %s298, 3
        %s300 = smul.addr %s296, 54
        %s301 = sadd.s32 %s299, %s300
        %s302 = smul.addr %s301, 8
        %s303 = scalar_lea.vmem %s1, %s302
        %p304 = pneg %p86
        %p305 = pneg %p83
        %s306 = smul.u32 %s24, 8
        %s307 = sadd.s32 %s306, 9
        %p308 = scmp.lt.s32.totalorder %s23, 1
        %s309 = scalar_select %p308, %s23, 1
        %p310 = scmp.lt.s32.totalorder %s307, 17
        %s311 = scalar_select %p310, %s307, 17
        %s312 = smul.addr %s311, 3
        %s313 = smul.addr %s309, 54
        %s314 = sadd.s32 %s312, %s313
        %s315 = smul.addr %s314, 8
        %s316 = scalar_lea.vmem %s2, %s315
        %p317 = pneg %p118
        %p318 = pneg %p115
        %p319 = pneg %p139
        %p320 = pneg %p136
        %p321 = pneg %p160
        %p322 = pneg %p157
        %p323 = pneg %p188
        %p324 = pneg %p185
        %s325 = sand.u32 %s175, 1
        %s326 = scalar_lea.sflag [#allocation3], %s325
        %s327 = sand.u32 %s175, 1
        %s328 = smul.addr %s327, 256
        %s329 = scalar_lea.vmem [#allocation2], %s328
        %s330 = smul.u32 8, %s24
        %s331 = ssub.s32 18, %s330
        %p332 = scmp.lt.s32.totalorder %s331, 8
        %s333 = scalar_select %p332, %s331, 8
        %s334 = smul.u32 128, %s333
        %s335 = smul.u32 %s334, 3
        %p336 = scmp.lt.s32.totalorder %s23, 1
        %s337 = scalar_select %p336, %s23, 1
        %p338 = scmp.lt.s32.totalorder %s330, 17
        %s339 = scalar_select %p338, %s330, 17
        %s340 = smul.addr %s339, 3
        %s341 = smul.addr %s337, 54
        %s342 = sadd.s32 %s340, %s341
        %s343 = smul.addr %s342, 8
        %s344 = scalar_lea.vmem %s0, %s343
        %s345 = smul.u32 8, %s24
        %s346 = ssub.s32 18, %s345
        %p347 = scmp.lt.s32.totalorder %s346, 8
        %s348 = scalar_select %p347, %s346, 8
        %s349 = smul.u32 128, %s348
        %s350 = smul.u32 %s349, 3
        %s351 = smul.u32 %s24, 8
        %s352 = sadd.s32 %s351, 8
        %p353 = scmp.lt.s32.totalorder %s23, 1
        %s354 = scalar_select %p353, %s23, 1
        %p355 = scmp.lt.s32.totalorder %s352, 17
        %s356 = scalar_select %p355, %s352, 17
        %s357 = smul.addr %s356, 3
        %s358 = smul.addr %s354, 54
        %s359 = sadd.s32 %s357, %s358
        %s360 = smul.addr %s359, 8
        %s361 = scalar_lea.vmem %s1, %s360
        %s362 = smul.u32 %s24, 8
        %s363 = sadd.s32 %s362, 8
        %s364 = smul.u32 %s24, 8
        %s365 = sadd.s32 %s364, 9
        %p366 = scmp.lt.s32.totalorder %s23, 1
        %s367 = scalar_select %p366, %s23, 1
        %p368 = scmp.lt.s32.totalorder %s365, 17
        %s369 = scalar_select %p368, %s365, 17
        %s370 = smul.addr %s369, 3
        %s371 = smul.addr %s367, 54
        %s372 = sadd.s32 %s370, %s371
        %s373 = smul.addr %s372, 8
        %s374 = scalar_lea.vmem %s2, %s373
        %s375 = smul.u32 %s24, 8
        %s376 = sadd.s32 %s375, 9
        %s377 = smul.u32 8, %s24
        %v378 = vld [vmem:[%s344] sm:$0xff]
        %v379 = vld [vmem:[%s344 + $0x8] sm:$0xff]
        %v380 = vld [vmem:[%s344 + $0x10] sm:$0x3]
        %v381 = vld [vmem:[%s344 + $0x18] sm:$0xff]
        %v382 = vld [vmem:[%s344 + $0x20] sm:$0xff]
        %v383 = vld [vmem:[%s344 + $0x28] sm:$0x3]
        %v384 = vld [vmem:[%s344 + $0x30] sm:$0xff]
        %v385 = vld [vmem:[%s344 + $0x38] sm:$0xff]
        %v386 = vld [vmem:[%s344 + $0x40] sm:$0x3]
        %v387 = vld [vmem:[%s344 + $0x48] sm:$0xff]
        %v388 = vld [vmem:[%s344 + $0x50] sm:$0xff]
        %v389 = vld [vmem:[%s344 + $0x58] sm:$0x3]
        %v390 = vld [vmem:[%s344 + $0x60] sm:$0xff]
        %v391 = vld [vmem:[%s344 + $0x68] sm:$0xff]
        %v392 = vld [vmem:[%s344 + $0x70] sm:$0x3]
        %v393 = vld [vmem:[%s344 + $0x78] sm:$0xff]
        %v394 = vld [vmem:[%s344 + $0x80] sm:$0xff]
        %v395 = vld [vmem:[%s344 + $0x88] sm:$0x3]
        %v396 = vld [vmem:[%s344 + $0x90] sm:$0xff]
        %v397 = vld [vmem:[%s344 + $0x98] sm:$0xff]
        %v398 = vld [vmem:[%s344 + $0xa0] sm:$0x3]
        %v399 = vld [vmem:[%s344 + $0xa8] sm:$0xff]
        %v400 = vld [vmem:[%s344 + $0xb0] sm:$0xff]
        %v401 = vld [vmem:[%s344 + $0xb8] sm:$0x3]
        %v402 = vld [vmem:[%s361] sm:$0xff]
        %v403 = vld [vmem:[%s361 + $0x8] sm:$0xff]
        %v404 = vld [vmem:[%s361 + $0x10] sm:$0x3]
        %v405 = vld [vmem:[%s374] sm:$0xff]
        %v406 = vld [vmem:[%s374 + $0x8] sm:$0xff]
        %v407 = vld [vmem:[%s374 + $0x10] sm:$0x3]
        %vm432 = vcmask 1046528
        %v433 = vrot.slane %v378, 1
        %v434 = vrot.slane %v379, 1
        %v435 = vsel %vm432, %v433, %v434
        %v436 = vrot.slane %v380, 1
        %v437 = vsel %vm432, %v434, %v436
        %v438 = vrot.slane %v381, 1
        %v439 = vrot.slane %v382, 1
        %v440 = vsel %vm432, %v438, %v439
        %v441 = vrot.slane %v383, 1
        %v442 = vsel %vm432, %v439, %v441
        %v443 = vrot.slane %v384, 1
        %v444 = vrot.slane %v385, 1
        %v445 = vsel %vm432, %v443, %v444
        %v446 = vrot.slane %v386, 1
        %v447 = vsel %vm432, %v444, %v446
        %v448 = vrot.slane %v387, 1
        %v449 = vrot.slane %v388, 1
        %v450 = vsel %vm432, %v448, %v449
        %v451 = vrot.slane %v389, 1
        %v452 = vsel %vm432, %v449, %v451
        %v453 = vrot.slane %v390, 1
        %v454 = vrot.slane %v391, 1
        %v455 = vsel %vm432, %v453, %v454
        %v456 = vrot.slane %v392, 1
        %v457 = vsel %vm432, %v454, %v456
        %v458 = vrot.slane %v393, 1
        %v459 = vrot.slane %v394, 1
        %v460 = vsel %vm432, %v458, %v459
        %v461 = vrot.slane %v395, 1
        %v462 = vsel %vm432, %v459, %v461
        %v463 = vrot.slane %v396, 1
        %v464 = vrot.slane %v397, 1
        %v465 = vsel %vm432, %v463, %v464
        %v466 = vrot.slane %v398, 1
        %v467 = vsel %vm432, %v464, %v466
        %v468 = vrot.slane %v399, 1
        %v469 = vrot.slane %v400, 1
        %v470 = vsel %vm432, %v468, %v469
        %v471 = vrot.slane %v401, 1
        %v472 = vsel %vm432, %v469, %v471
        %vm473 = vcmask 1045504
        %v474 = vrot.slane %v378, 2
        %v475 = vrot.slane %v379, 2
        %v476 = vsel %vm473, %v474, %v475
        %v477 = vrot.slane %v380, 2
        %v478 = vsel %vm473, %v475, %v477
        %v479 = vrot.slane %v381, 2
        %v480 = vrot.slane %v382, 2
        %v481 = vsel %vm473, %v479, %v480
        %v482 = vrot.slane %v383, 2
        %v483 = vsel %vm473, %v480, %v482
        %v484 = vrot.slane %v384, 2
        %v485 = vrot.slane %v385, 2
        %v486 = vsel %vm473, %v484, %v485
        %v487 = vrot.slane %v386, 2
        %v488 = vsel %vm473, %v485, %v487
        %v489 = vrot.slane %v387, 2
        %v490 = vrot.slane %v388, 2
        %v491 = vsel %vm473, %v489, %v490
        %v492 = vrot.slane %v389, 2
        %v493 = vsel %vm473, %v490, %v492
        %v494 = vrot.slane %v390, 2
        %v495 = vrot.slane %v391, 2
        %v496 = vsel %vm473, %v494, %v495
        %v497 = vrot.slane %v392, 2
        %v498 = vsel %vm473, %v495, %v497
        %v499 = vrot.slane %v393, 2
        %v500 = vrot.slane %v394, 2
        %v501 = vsel %vm473, %v499, %v500
        %v502 = vrot.slane %v395, 2
        %v503 = vsel %vm473, %v500, %v502
        %v504 = vrot.slane %v396, 2
        %v505 = vrot.slane %v397, 2
        %v506 = vsel %vm473, %v504, %v505
        %v507 = vrot.slane %v398, 2
        %v508 = vsel %vm473, %v505, %v507
        %v509 = vrot.slane %v399, 2
        %v510 = vrot.slane %v400, 2
        %v511 = vsel %vm473, %v509, %v510
        %v512 = vrot.slane %v401, 2
        %v513 = vsel %vm473, %v510, %v512
        %v517 = vrot.slane %v402, 1
        %v518 = vrot.slane %v403, 1
        %v519 = vsel %vm432, %v517, %v518
        %v520 = vrot.slane %v404, 1
        %v521 = vsel %vm432, %v518, %v520
        %v522 = vrot.slane %v402, 2
        %v523 = vrot.slane %v403, 2
        %v524 = vsel %vm473, %v522, %v523
        %v525 = vrot.slane %v404, 2
        %v526 = vsel %vm473, %v523, %v525
        %v530 = vrot.slane %v405, 1
        %v531 = vrot.slane %v406, 1
        %v532 = vsel %vm432, %v530, %v531
        %v533 = vrot.slane %v407, 1
        %v534 = vsel %vm432, %v531, %v533
        %v535 = vrot.slane %v405, 2
        %v536 = vrot.slane %v406, 2
        %v537 = vsel %vm473, %v535, %v536
        %v538 = vrot.slane %v407, 2
        %v539 = vsel %vm473, %v536, %v538
        %v540 = vld [vmem:[%s4] sm:$0x1]
        %v541 = vld [vmem:[%s3] sm:$0xff]
        %s542 = scalar_lea.vmem %s3, 8
        %v543 = vld [vmem:[%s542] sm:$0xff]
        %vm544 = vcmask 64512
        %v545 = vsel %vm544, %v435, 0
        %v547 = vsel %vm544, %v437, 0
        %v549 = vsel %vm544, %v440, 0
        %v551 = vsel %vm544, %v442, 0
        %v553 = vsel %vm544, %v445, 0
        %v555 = vsel %vm544, %v447, 0
        %v557 = vsel %vm544, %v450, 0
        %v559 = vsel %vm544, %v452, 0
        %v561 = vsel %vm544, %v455, 0
        %v563 = vsel %vm544, %v457, 0
        %v565 = vsel %vm544, %v460, 0
        %v567 = vsel %vm544, %v462, 0
        %v569 = vsel %vm544, %v465, 0
        %v571 = vsel %vm544, %v467, 0
        %v573 = vsel %vm544, %v470, 0
        %v575 = vsel %vm544, %v472, 0
        %577 = vmatprep.subr.mxu0 0.0
        %578 = vmatpush1.msra.mxu0 %v543
        %579 = vmatprep.subr.mxu0 0.0
        %580 = vmatpush1.msra.mxu0 0.0
        %581 = vmatprep.subr.mxu0 0.0
        %582 = vmatpush1.msra.mxu0 0.0
        %583 = vmatprep.subr.mxu0 0.0
        %584 = vmatpush1.msra.mxu0 0.0
        %585 = vmatprep.subr.mxu0 0.0
        %586 = vmatpush1.msra.mxu0 0.0
        %587 = vmatprep.subr.mxu0 0.0
        %588 = vmatpush1.msra.mxu0 0.0
        %589 = vmatprep.subr.mxu0 0.0
        %590 = vmatpush1.msra.mxu0 0.0
        %591 = vmatprep.subr.mxu0 0.0
        %592 = vmatpush1.msra.mxu0 0.0
        %593 = vmatprep.subr.mxu0 0.0
        %594 = vmatpush1.msra.mxu0 0.0
        %595 = vmatprep.subr.mxu0 0.0
        %596 = vmatpush1.msra.mxu0 0.0
        %597 = vmatprep.subr.mxu0 0.0
        %598 = vmatpush1.msra.mxu0 0.0
        %599 = vmatprep.subr.mxu0 0.0
        %600 = vmatpush1.msra.mxu0 0.0
        %601 = vmatprep.subr.mxu0 0.0
        %602 = vmatpush1.msra.mxu0 0.0
        %603 = vmatprep.subr.mxu0 0.0
        %604 = vmatpush1.msra.mxu0 0.0
        %605 = vmatprep.subr.mxu0 0.0
        %606 = vmatpush1.msra.mxu0 0.0
        %607 = vmatprep.subr.mxu0 0.0
        %608 = vmatpush1.msra.mxu0 0.0
        %609 = vmatprep.subr.mxu0 0.0
        %610 = vmatpush1.msra.mxu0 0.0
        %611 = vmatprep.subr.mxu0 0.0
        %612 = vmatpush1.msra.mxu0 0.0
        %613 = vmatprep.subr.mxu0 0.0
        %614 = vmatpush1.msra.mxu0 0.0
        %615 = vmatprep.subr.mxu0 0.0
        %616 = vmatpush1.msra.mxu0 0.0
        %617 = vmatprep.subr.mxu0 0.0
        %618 = vmatpush1.msra.mxu0 0.0
        %619 = vmatprep.subr.mxu0 0.0
        %620 = vmatpush1.msra.mxu0 0.0
        %621 = vmatprep.subr.mxu0 0.0
        %622 = vmatpush1.msra.mxu0 0.0
        %623 = vmatprep.subr.mxu0 0.0
        %624 = vmatpush1.msra.mxu0 0.0
        %625 = vmatprep.subr.mxu0 0.0
        %626 = vmatpush1.msra.mxu0 0.0
        %627 = vmatprep.subr.mxu0 0.0
        %628 = vmatpush1.msra.mxu0 0.0
        %629 = vmatprep.subr.mxu0 0.0
        %630 = vmatpush1.msra.mxu0 0.0
        %631 = vmatprep.subr.mxu0 0.0
        %632 = vmatpush1.msra.mxu0 0.0
        %633 = vmatprep.subr.mxu0 0.0
        %634 = vmatpush1.msra.mxu0 0.0
        %635 = vmatprep.subr.mxu0 0.0
        %636 = vmatpush1.msra.mxu0 0.0
        %637 = vmatprep.subr.mxu0 0.0
        %638 = vmatpush1.msra.mxu0 0.0
        %639 = vmatprep.subr.mxu0 0.0
        %640 = vmatpush1.msra.mxu0 0.0
        %641 = vmatprep.mubr.f32.mxu0 0.0
        %642 = vmatmul.mubr.f32.gmra.mrb[0].mxu0 %v545
        %v643 = vpop.f32.mrb[0].mxu0
        %v644 = vadd.f32 0.0, %v643
        %v645 = vpop.f32.mrb[0].mxu0
        %646 = vmatprep.mubr.f32.mxu0 0.0
        %647 = vmatmul.mubr.f32.gmra.mrb[0].mxu0 %v547
        %v648 = vpop.f32.mrb[0].mxu0
        %v649 = vadd.f32 0.0, %v648
        %v650 = vpop.f32.mrb[0].mxu0
        %651 = vmatprep.mubr.f32.mxu0 0.0
        %652 = vmatmul.mubr.f32.gmra.mrb[0].mxu0 %v549
        %v653 = vpop.f32.mrb[0].mxu0
        %v654 = vadd.f32 0.0, %v653
        %v655 = vpop.f32.mrb[0].mxu0
        %656 = vmatprep.mubr.f32.mxu0 0.0
        %657 = vmatmul.mubr.f32.gmra.mrb[0].mxu0 %v551
        %v658 = vpop.f32.mrb[0].mxu0
        %v659 = vadd.f32 0.0, %v658
        %v660 = vpop.f32.mrb[0].mxu0
        %661 = vmatprep.mubr.f32.mxu0 0.0
        %662 = vmatmul.mubr.f32.gmra.mrb[0].mxu0 %v553
        %v663 = vpop.f32.mrb[0].mxu0
        %v664 = vadd.f32 0.0, %v663
        %v665 = vpop.f32.mrb[0].mxu0
        %666 = vmatprep.mubr.f32.mxu0 0.0
        %667 = vmatmul.mubr.f32.gmra.mrb[0].mxu0 %v555
        %v668 = vpop.f32.mrb[0].mxu0
        %v669 = vadd.f32 0.0, %v668
        %v670 = vpop.f32.mrb[0].mxu0
        %671 = vmatprep.mubr.f32.mxu0 0.0
        %672 = vmatmul.mubr.f32.gmra.mrb[0].mxu0 %v557
        %v673 = vpop.f32.mrb[0].mxu0
        %v674 = vadd.f32 0.0, %v673
        %v675 = vpop.f32.mrb[0].mxu0
        %676 = vmatprep.mubr.f32.mxu0 0.0
        %677 = vmatmul.mubr.f32.gmra.mrb[0].mxu0 %v559
        %v678 = vpop.f32.mrb[0].mxu0
        %v679 = vadd.f32 0.0, %v678
        %v680 = vpop.f32.mrb[0].mxu0
        %681 = vmatprep.mubr.f32.mxu0 0.0
        %682 = vmatmul.mubr.f32.gmra.mrb[0].mxu0 %v561
        %v683 = vpop.f32.mrb[0].mxu0
        %v684 = vadd.f32 0.0, %v683
        %v685 = vpop.f32.mrb[0].mxu0
        %686 = vmatprep.mubr.f32.mxu0 0.0
        %687 = vmatmul.mubr.f32.gmra.mrb[0].mxu0 %v563
        %v688 = vpop.f32.mrb[0].mxu0
        %v689 = vadd.f32 0.0, %v688
        %v690 = vpop.f32.mrb[0].mxu0
        %691 = vmatprep.mubr.f32.mxu0 0.0
        %692 = vmatmul.mubr.f32.gmra.mrb[0].mxu0 %v565
        %v693 = vpop.f32.mrb[0].mxu0
        %v694 = vadd.f32 0.0, %v693
        %v695 = vpop.f32.mrb[0].mxu0
        %696 = vmatprep.mubr.f32.mxu0 0.0
        %697 = vmatmul.mubr.f32.gmra.mrb[0].mxu0 %v567
        %v698 = vpop.f32.mrb[0].mxu0
        %v699 = vadd.f32 0.0, %v698
        %v700 = vpop.f32.mrb[0].mxu0
        %701 = vmatprep.mubr.f32.mxu0 0.0
        %702 = vmatmul.mubr.f32.gmra.mrb[0].mxu0 %v569
        %v703 = vpop.f32.mrb[0].mxu0
        %v704 = vadd.f32 0.0, %v703
        %v705 = vpop.f32.mrb[0].mxu0
        %706 = vmatprep.mubr.f32.mxu0 0.0
        %707 = vmatmul.mubr.f32.gmra.mrb[0].mxu0 %v571
        %v708 = vpop.f32.mrb[0].mxu0
        %v709 = vadd.f32 0.0, %v708
        %v710 = vpop.f32.mrb[0].mxu0
        %711 = vmatprep.mubr.f32.mxu0 0.0
        %712 = vmatmul.mubr.f32.gmra.mrb[0].mxu0 %v573
        %v713 = vpop.f32.mrb[0].mxu0
        %v714 = vadd.f32 0.0, %v713
        %v715 = vpop.f32.mrb[0].mxu0
        %716 = vmatprep.mubr.f32.mxu0 0.0
        %717 = vmatmul.mubr.f32.gmra.mrb[0].mxu0 %v575
        %v718 = vpop.f32.mrb[0].mxu0
        %v719 = vadd.f32 0.0, %v718
        %v720 = vpop.f32.mrb[0].mxu0
        %721 = vdwg.mxu0
        %v722 = vsel %vm544, %v378, 0
        %v724 = vsel %vm544, %v379, 0
        %v726 = vsel %vm544, %v381, 0
        %v728 = vsel %vm544, %v382, 0
        %v730 = vsel %vm544, %v384, 0
        %v732 = vsel %vm544, %v385, 0
        %v734 = vsel %vm544, %v387, 0
        %v736 = vsel %vm544, %v388, 0
        %v738 = vsel %vm544, %v390, 0
        %v740 = vsel %vm544, %v391, 0
        %v742 = vsel %vm544, %v393, 0
        %v744 = vsel %vm544, %v394, 0
        %v746 = vsel %vm544, %v396, 0
        %v748 = vsel %vm544, %v397, 0
        %v750 = vsel %vm544, %v399, 0
        %v752 = vsel %vm544, %v400, 0
        %754 = vmatprep.subr.mxu0 0.0
        %755 = vmatpush1.msra.mxu0 %v541
        %756 = vmatprep.subr.mxu0 0.0
        %757 = vmatpush1.msra.mxu0 0.0
        %758 = vmatprep.subr.mxu0 0.0
        %759 = vmatpush1.msra.mxu0 0.0
        %760 = vmatprep.subr.mxu0 0.0
        %761 = vmatpush1.msra.mxu0 0.0
        %762 = vmatprep.subr.mxu0 0.0
        %763 = vmatpush1.msra.mxu0 0.0
        %764 = vmatprep.subr.mxu0 0.0
        %765 = vmatpush1.msra.mxu0 0.0
        %766 = vmatprep.subr.mxu0 0.0
        %767 = vmatpush1.msra.mxu0 0.0
        %768 = vmatprep.subr.mxu0 0.0
        %769 = vmatpush1.msra.mxu0 0.0
        %770 = vmatprep.subr.mxu0 0.0
        %771 = vmatpush1.msra.mxu0 0.0
        %772 = vmatprep.subr.mxu0 0.0
        %773 = vmatpush1.msra.mxu0 0.0
        %774 = vmatprep.subr.mxu0 0.0
        %775 = vmatpush1.msra.mxu0 0.0
        %776 = vmatprep.subr.mxu0 0.0
        %777 = vmatpush1.msra.mxu0 0.0
        %778 = vmatprep.subr.mxu0 0.0
        %779 = vmatpush1.msra.mxu0 0.0
        %780 = vmatprep.subr.mxu0 0.0
        %781 = vmatpush1.msra.mxu0 0.0
        %782 = vmatprep.subr.mxu0 0.0
        %783 = vmatpush1.msra.mxu0 0.0
        %784 = vmatprep.subr.mxu0 0.0
        %785 = vmatpush1.msra.mxu0 0.0
        %786 = vmatprep.subr.mxu0 0.0
        %787 = vmatpush1.msra.mxu0 0.0
        %788 = vmatprep.subr.mxu0 0.0
        %789 = vmatpush1.msra.mxu0 0.0
        %790 = vmatprep.subr.mxu0 0.0
        %791 = vmatpush1.msra.mxu0 0.0
        %792 = vmatprep.subr.mxu0 0.0
        %793 = vmatpush1.msra.mxu0 0.0
        %794 = vmatprep.subr.mxu0 0.0
        %795 = vmatpush1.msra.mxu0 0.0
        %796 = vmatprep.subr.mxu0 0.0
        %797 = vmatpush1.msra.mxu0 0.0
        %798 = vmatprep.subr.mxu0 0.0
        %799 = vmatpush1.msra.mxu0 0.0
        %800 = vmatprep.subr.mxu0 0.0
        %801 = vmatpush1.msra.mxu0 0.0
        %802 = vmatprep.subr.mxu0 0.0
        %803 = vmatpush1.msra.mxu0 0.0
        %804 = vmatprep.subr.mxu0 0.0
        %805 = vmatpush1.msra.mxu0 0.0
        %806 = vmatprep.subr.mxu0 0.0
        %807 = vmatpush1.msra.mxu0 0.0
        %808 = vmatprep.subr.mxu0 0.0
        %809 = vmatpush1.msra.mxu0 0.0
        %810 = vmatprep.subr.mxu0 0.0
        %811 = vmatpush1.msra.mxu0 0.0
        %812 = vmatprep.subr.mxu0 0.0
        %813 = vmatpush1.msra.mxu0 0.0
        %814 = vmatprep.subr.mxu0 0.0
        %815 = vmatpush1.msra.mxu0 0.0
        %816 = vmatprep.subr.mxu0 0.0
        %817 = vmatpush1.msra.mxu0 0.0
        %818 = vmatprep.mubr.f32.mxu0 0.0
        %819 = vmatmul.mubr.f32.gmra.mrb[0].mxu0 %v722
        %v820 = vpop.f32.mrb[0].mxu0
        %v821 = vadd.f32 %v644, %v820
        %v822 = vpop.f32.mrb[0].mxu0
        %823 = vmatprep.mubr.f32.mxu0 0.0
        %824 = vmatmul.mubr.f32.gmra.mrb[0].mxu0 %v724
        %v825 = vpop.f32.mrb[0].mxu0
        %v826 = vadd.f32 %v649, %v825
        %v827 = vpop.f32.mrb[0].mxu0
        %828 = vmatprep.mubr.f32.mxu0 0.0
        %829 = vmatmul.mubr.f32.gmra.mrb[0].mxu0 %v726
        %v830 = vpop.f32.mrb[0].mxu0
        %v831 = vadd.f32 %v654, %v830
        %v832 = vpop.f32.mrb[0].mxu0
        %833 = vmatprep.mubr.f32.mxu0 0.0
        %834 = vmatmul.mubr.f32.gmra.mrb[0].mxu0 %v728
        %v835 = vpop.f32.mrb[0].mxu0
        %v836 = vadd.f32 %v659, %v835
        %v837 = vpop.f32.mrb[0].mxu0
        %838 = vmatprep.mubr.f32.mxu0 0.0
        %839 = vmatmul.mubr.f32.gmra.mrb[0].mxu0 %v730
        %v840 = vpop.f32.mrb[0].mxu0
        %v841 = vadd.f32 %v664, %v840
        %v842 = vpop.f32.mrb[0].mxu0
        %843 = vmatprep.mubr.f32.mxu0 0.0
        %844 = vmatmul.mubr.f32.gmra.mrb[0].mxu0 %v732
        %v845 = vpop.f32.mrb[0].mxu0
        %v846 = vadd.f32 %v669, %v845
        %v847 = vpop.f32.mrb[0].mxu0
        %848 = vmatprep.mubr.f32.mxu0 0.0
        %849 = vmatmul.mubr.f32.gmra.mrb[0].mxu0 %v734
        %v850 = vpop.f32.mrb[0].mxu0
        %v851 = vadd.f32 %v674, %v850
        %v852 = vpop.f32.mrb[0].mxu0
        %853 = vmatprep.mubr.f32.mxu0 0.0
        %854 = vmatmul.mubr.f32.gmra.mrb[0].mxu0 %v736
        %v855 = vpop.f32.mrb[0].mxu0
        %v856 = vadd.f32 %v679, %v855
        %v857 = vpop.f32.mrb[0].mxu0
        %858 = vmatprep.mubr.f32.mxu0 0.0
        %859 = vmatmul.mubr.f32.gmra.mrb[0].mxu0 %v738
        %v860 = vpop.f32.mrb[0].mxu0
        %v861 = vadd.f32 %v684, %v860
        %v862 = vpop.f32.mrb[0].mxu0
        %863 = vmatprep.mubr.f32.mxu0 0.0
        %864 = vmatmul.mubr.f32.gmra.mrb[0].mxu0 %v740
        %v865 = vpop.f32.mrb[0].mxu0
        %v866 = vadd.f32 %v689, %v865
        %v867 = vpop.f32.mrb[0].mxu0
        %868 = vmatprep.mubr.f32.mxu0 0.0
        %869 = vmatmul.mubr.f32.gmra.mrb[0].mxu0 %v742
        %v870 = vpop.f32.mrb[0].mxu0
        %v871 = vadd.f32 %v694, %v870
        %v872 = vpop.f32.mrb[0].mxu0
        %873 = vmatprep.mubr.f32.mxu0 0.0
        %874 = vmatmul.mubr.f32.gmra.mrb[0].mxu0 %v744
        %v875 = vpop.f32.mrb[0].mxu0
        %v876 = vadd.f32 %v699, %v875
        %v877 = vpop.f32.mrb[0].mxu0
        %878 = vmatprep.mubr.f32.mxu0 0.0
        %879 = vmatmul.mubr.f32.gmra.mrb[0].mxu0 %v746
        %v880 = vpop.f32.mrb[0].mxu0
        %v881 = vadd.f32 %v704, %v880
        %v882 = vpop.f32.mrb[0].mxu0
        %883 = vmatprep.mubr.f32.mxu0 0.0
        %884 = vmatmul.mubr.f32.gmra.mrb[0].mxu0 %v748
        %v885 = vpop.f32.mrb[0].mxu0
        %v886 = vadd.f32 %v709, %v885
        %v887 = vpop.f32.mrb[0].mxu0
        %888 = vmatprep.mubr.f32.mxu0 0.0
        %889 = vmatmul.mubr.f32.gmra.mrb[0].mxu0 %v750
        %v890 = vpop.f32.mrb[0].mxu0
        %v891 = vadd.f32 %v714, %v890
        %v892 = vpop.f32.mrb[0].mxu0
        %893 = vmatprep.mubr.f32.mxu0 0.0
        %894 = vmatmul.mubr.f32.gmra.mrb[0].mxu0 %v752
        %v895 = vpop.f32.mrb[0].mxu0
        %v896 = vadd.f32 %v719, %v895
        %v897 = vpop.f32.mrb[0].mxu0
        %898 = vdwg.mxu0
        %s899 = scalar_lea.vmem %s3, 16
        %v900 = vld [vmem:[%s899] sm:$0xff]
        %v901 = vsel %vm544, %v476, 0
        %v903 = vsel %vm544, %v478, 0
        %v905 = vsel %vm544, %v481, 0
        %v907 = vsel %vm544, %v483, 0
        %v909 = vsel %vm544, %v486, 0
        %v911 = vsel %vm544, %v488, 0
        %v913 = vsel %vm544, %v491, 0
        %v915 = vsel %vm544, %v493, 0
        %v917 = vsel %vm544, %v496, 0
        %v919 = vsel %vm544, %v498, 0
        %v921 = vsel %vm544, %v501, 0
        %v923 = vsel %vm544, %v503, 0
        %v925 = vsel %vm544, %v506, 0
        %v927 = vsel %vm544, %v508, 0
        %v929 = vsel %vm544, %v511, 0
        %v931 = vsel %vm544, %v513, 0
        %933 = vmatprep.subr.mxu0 0.0
        %934 = vmatpush1.msra.mxu0 %v900
        %935 = vmatprep.subr.mxu0 0.0
        %936 = vmatpush1.msra.mxu0 0.0
        %937 = vmatprep.subr.mxu0 0.0
        %938 = vmatpush1.msra.mxu0 0.0
        %939 = vmatprep.subr.mxu0 0.0
        %940 = vmatpush1.msra.mxu0 0.0
        %941 = vmatprep.subr.mxu0 0.0
        %942 = vmatpush1.msra.mxu0 0.0
        %943 = vmatprep.subr.mxu0 0.0
        %944 = vmatpush1.msra.mxu0 0.0
        %945 = vmatprep.subr.mxu0 0.0
        %946 = vmatpush1.msra.mxu0 0.0
        %947 = vmatprep.subr.mxu0 0.0
        %948 = vmatpush1.msra.mxu0 0.0
        %949 = vmatprep.subr.mxu0 0.0
        %950 = vmatpush1.msra.mxu0 0.0
        %951 = vmatprep.subr.mxu0 0.0
        %952 = vmatpush1.msra.mxu0 0.0
        %953 = vmatprep.subr.mxu0 0.0
        %954 = vmatpush1.msra.mxu0 0.0
        %955 = vmatprep.subr.mxu0 0.0
        %956 = vmatpush1.msra.mxu0 0.0
        %957 = vmatprep.subr.mxu0 0.0
        %958 = vmatpush1.msra.mxu0 0.0
        %959 = vmatprep.subr.mxu0 0.0
        %960 = vmatpush1.msra.mxu0 0.0
        %961 = vmatprep.subr.mxu0 0.0
        %962 = vmatpush1.msra.mxu0 0.0
        %963 = vmatprep.subr.mxu0 0.0
        %964 = vmatpush1.msra.mxu0 0.0
        %965 = vmatprep.subr.mxu0 0.0
        %966 = vmatpush1.msra.mxu0 0.0
        %967 = vmatprep.subr.mxu0 0.0
        %968 = vmatpush1.msra.mxu0 0.0
        %969 = vmatprep.subr.mxu0 0.0
        %970 = vmatpush1.msra.mxu0 0.0
        %971 = vmatprep.subr.mxu0 0.0
        %972 = vmatpush1.msra.mxu0 0.0
        %973 = vmatprep.subr.mxu0 0.0
        %974 = vmatpush1.msra.mxu0 0.0
        %975 = vmatprep.subr.mxu0 0.0
        %976 = vmatpush1.msra.mxu0 0.0
        %977 = vmatprep.subr.mxu0 0.0
        %978 = vmatpush1.msra.mxu0 0.0
        %979 = vmatprep.subr.mxu0 0.0
        %980 = vmatpush1.msra.mxu0 0.0
        %981 = vmatprep.subr.mxu0 0.0
        %982 = vmatpush1.msra.mxu0 0.0
        %983 = vmatprep.subr.mxu0 0.0
        %984 = vmatpush1.msra.mxu0 0.0
        %985 = vmatprep.subr.mxu0 0.0
        %986 = vmatpush1.msra.mxu0 0.0
        %987 = vmatprep.subr.mxu0 0.0
        %988 = vmatpush1.msra.mxu0 0.0
        %989 = vmatprep.subr.mxu0 0.0
        %990 = vmatpush1.msra.mxu0 0.0
        %991 = vmatprep.subr.mxu0 0.0
        %992 = vmatpush1.msra.mxu0 0.0
        %993 = vmatprep.subr.mxu0 0.0
        %994 = vmatpush1.msra.mxu0 0.0
        %995 = vmatprep.subr.mxu0 0.0
        %996 = vmatpush1.msra.mxu0 0.0
        %997 = vmatprep.mubr.f32.mxu0 0.0
        %998 = vmatmul.mubr.f32.gmra.mrb[0].mxu0 %v901
        %v999 = vpop.f32.mrb[0].mxu0
        %v1000 = vadd.f32 0.0, %v999
        %v1001 = vpop.f32.mrb[0].mxu0
        %1002 = vmatprep.mubr.f32.mxu0 0.0
        %1003 = vmatmul.mubr.f32.gmra.mrb[0].mxu0 %v903
        %v1004 = vpop.f32.mrb[0].mxu0
        %v1005 = vadd.f32 0.0, %v1004
        %v1006 = vpop.f32.mrb[0].mxu0
        %1007 = vmatprep.mubr.f32.mxu0 0.0
        %1008 = vmatmul.mubr.f32.gmra.mrb[0].mxu0 %v905
        %v1009 = vpop.f32.mrb[0].mxu0
        %v1010 = vadd.f32 0.0, %v1009
        %v1011 = vpop.f32.mrb[0].mxu0
        %1012 = vmatprep.mubr.f32.mxu0 0.0
        %1013 = vmatmul.mubr.f32.gmra.mrb[0].mxu0 %v907
        %v1014 = vpop.f32.mrb[0].mxu0
        %v1015 = vadd.f32 0.0, %v1014
        %v1016 = vpop.f32.mrb[0].mxu0
        %1017 = vmatprep.mubr.f32.mxu0 0.0
        %1018 = vmatmul.mubr.f32.gmra.mrb[0].mxu0 %v909
        %v1019 = vpop.f32.mrb[0].mxu0
        %v1020 = vadd.f32 0.0, %v1019
        %v1021 = vpop.f32.mrb[0].mxu0
        %1022 = vmatprep.mubr.f32.mxu0 0.0
        %1023 = vmatmul.mubr.f32.gmra.mrb[0].mxu0 %v911
        %v1024 = vpop.f32.mrb[0].mxu0
        %v1025 = vadd.f32 0.0, %v1024
        %v1026 = vpop.f32.mrb[0].mxu0
        %1027 = vmatprep.mubr.f32.mxu0 0.0
        %1028 = vmatmul.mubr.f32.gmra.mrb[0].mxu0 %v913
        %v1029 = vpop.f32.mrb[0].mxu0
        %v1030 = vadd.f32 0.0, %v1029
        %v1031 = vpop.f32.mrb[0].mxu0
        %1032 = vmatprep.mubr.f32.mxu0 0.0
        %1033 = vmatmul.mubr.f32.gmra.mrb[0].mxu0 %v915
        %v1034 = vpop.f32.mrb[0].mxu0
        %v1035 = vadd.f32 0.0, %v1034
        %v1036 = vpop.f32.mrb[0].mxu0
        %1037 = vmatprep.mubr.f32.mxu0 0.0
        %1038 = vmatmul.mubr.f32.gmra.mrb[0].mxu0 %v917
        %v1039 = vpop.f32.mrb[0].mxu0
        %v1040 = vadd.f32 0.0, %v1039
        %v1041 = vpop.f32.mrb[0].mxu0
        %1042 = vmatprep.mubr.f32.mxu0 0.0
        %1043 = vmatmul.mubr.f32.gmra.mrb[0].mxu0 %v919
        %v1044 = vpop.f32.mrb[0].mxu0
        %v1045 = vadd.f32 0.0, %v1044
        %v1046 = vpop.f32.mrb[0].mxu0
        %1047 = vmatprep.mubr.f32.mxu0 0.0
        %1048 = vmatmul.mubr.f32.gmra.mrb[0].mxu0 %v921
        %v1049 = vpop.f32.mrb[0].mxu0
        %v1050 = vadd.f32 0.0, %v1049
        %v1051 = vpop.f32.mrb[0].mxu0
        %1052 = vmatprep.mubr.f32.mxu0 0.0
        %1053 = vmatmul.mubr.f32.gmra.mrb[0].mxu0 %v923
        %v1054 = vpop.f32.mrb[0].mxu0
        %v1055 = vadd.f32 0.0, %v1054
        %v1056 = vpop.f32.mrb[0].mxu0
        %1057 = vmatprep.mubr.f32.mxu0 0.0
        %1058 = vmatmul.mubr.f32.gmra.mrb[0].mxu0 %v925
        %v1059 = vpop.f32.mrb[0].mxu0
        %v1060 = vadd.f32 0.0, %v1059
        %v1061 = vpop.f32.mrb[0].mxu0
        %1062 = vmatprep.mubr.f32.mxu0 0.0
        %1063 = vmatmul.mubr.f32.gmra.mrb[0].mxu0 %v927
        %v1064 = vpop.f32.mrb[0].mxu0
        %v1065 = vadd.f32 0.0, %v1064
        %v1066 = vpop.f32.mrb[0].mxu0
        %1067 = vmatprep.mubr.f32.mxu0 0.0
        %1068 = vmatmul.mubr.f32.gmra.mrb[0].mxu0 %v929
        %v1069 = vpop.f32.mrb[0].mxu0
        %v1070 = vadd.f32 0.0, %v1069
        %v1071 = vpop.f32.mrb[0].mxu0
        %1072 = vmatprep.mubr.f32.mxu0 0.0
        %1073 = vmatmul.mubr.f32.gmra.mrb[0].mxu0 %v931
        %v1074 = vpop.f32.mrb[0].mxu0
        %v1075 = vadd.f32 0.0, %v1074
        %v1076 = vpop.f32.mrb[0].mxu0
        %1077 = vdwg.mxu0
        %v1078 = vadd.f32 %v821, %v1000
        %v1079 = vadd.f32 %v826, %v1005
        %v1080 = vadd.f32 %v831, %v1010
        %v1081 = vadd.f32 %v836, %v1015
        %v1082 = vadd.f32 %v841, %v1020
        %v1083 = vadd.f32 %v846, %v1025
        %v1084 = vadd.f32 %v851, %v1030
        %v1085 = vadd.f32 %v856, %v1035
        %v1086 = vadd.f32 %v861, %v1040
        %v1087 = vadd.f32 %v866, %v1045
        %v1088 = vadd.f32 %v871, %v1050
        %v1089 = vadd.f32 %v876, %v1055
        %v1090 = vadd.f32 %v881, %v1060
        %v1091 = vadd.f32 %v886, %v1065
        %v1092 = vadd.f32 %v891, %v1070
        %v1093 = vadd.f32 %v896, %v1075
        %s1094 = scalar_lea.vmem %s3, 24
        %v1095 = vld [vmem:[%s1094] sm:$0xff]
        %v1096 = vsel %vm544, %v402, 0
        %v1098 = vsel %vm544, %v403, 0
        %1100 = vmatprep.subr.mxu0 0.0
        %1101 = vmatpush1.msra.mxu0 %v1095
        %1102 = vmatprep.subr.mxu0 0.0
        %1103 = vmatpush1.msra.mxu0 0.0
        %1104 = vmatprep.subr.mxu0 0.0
        %1105 = vmatpush1.msra.mxu0 0.0
        %1106 = vmatprep.subr.mxu0 0.0
        %1107 = vmatpush1.msra.mxu0 0.0
        %1108 = vmatprep.subr.mxu0 0.0
        %1109 = vmatpush1.msra.mxu0 0.0
        %1110 = vmatprep.subr.mxu0 0.0
        %1111 = vmatpush1.msra.mxu0 0.0
        %1112 = vmatprep.subr.mxu0 0.0
        %1113 = vmatpush1.msra.mxu0 0.0
        %1114 = vmatprep.subr.mxu0 0.0
        %1115 = vmatpush1.msra.mxu0 0.0
        %1116 = vmatprep.subr.mxu0 0.0
        %1117 = vmatpush1.msra.mxu0 0.0
        %1118 = vmatprep.subr.mxu0 0.0
        %1119 = vmatpush1.msra.mxu0 0.0
        %1120 = vmatprep.subr.mxu0 0.0
        %1121 = vmatpush1.msra.mxu0 0.0
        %1122 = vmatprep.subr.mxu0 0.0
        %1123 = vmatpush1.msra.mxu0 0.0
        %1124 = vmatprep.subr.mxu0 0.0
        %1125 = vmatpush1.msra.mxu0 0.0
        %1126 = vmatprep.subr.mxu0 0.0
        %1127 = vmatpush1.msra.mxu0 0.0
        %1128 = vmatprep.subr.mxu0 0.0
        %1129 = vmatpush1.msra.mxu0 0.0
        %1130 = vmatprep.subr.mxu0 0.0
        %1131 = vmatpush1.msra.mxu0 0.0
        %1132 = vmatprep.subr.mxu0 0.0
        %1133 = vmatpush1.msra.mxu0 0.0
        %1134 = vmatprep.subr.mxu0 0.0
        %1135 = vmatpush1.msra.mxu0 0.0
        %1136 = vmatprep.subr.mxu0 0.0
        %1137 = vmatpush1.msra.mxu0 0.0
        %1138 = vmatprep.subr.mxu0 0.0
        %1139 = vmatpush1.msra.mxu0 0.0
        %1140 = vmatprep.subr.mxu0 0.0
        %1141 = vmatpush1.msra.mxu0 0.0
        %1142 = vmatprep.subr.mxu0 0.0
        %1143 = vmatpush1.msra.mxu0 0.0
        %1144 = vmatprep.subr.mxu0 0.0
        %1145 = vmatpush1.msra.mxu0 0.0
        %1146 = vmatprep.subr.mxu0 0.0
        %1147 = vmatpush1.msra.mxu0 0.0
        %1148 = vmatprep.subr.mxu0 0.0
        %1149 = vmatpush1.msra.mxu0 0.0
        %1150 = vmatprep.subr.mxu0 0.0
        %1151 = vmatpush1.msra.mxu0 0.0
        %1152 = vmatprep.subr.mxu0 0.0
        %1153 = vmatpush1.msra.mxu0 0.0
        %1154 = vmatprep.subr.mxu0 0.0
        %1155 = vmatpush1.msra.mxu0 0.0
        %1156 = vmatprep.subr.mxu0 0.0
        %1157 = vmatpush1.msra.mxu0 0.0
        %1158 = vmatprep.subr.mxu0 0.0
        %1159 = vmatpush1.msra.mxu0 0.0
        %1160 = vmatprep.subr.mxu0 0.0
        %1161 = vmatpush1.msra.mxu0 0.0
        %1162 = vmatprep.subr.mxu0 0.0
        %1163 = vmatpush1.msra.mxu0 0.0
        %1164 = vmatprep.mubr.f32.mxu0 0.0
        %1165 = vmatmul.mubr.f32.gmra.mrb[0].mxu0 %v726
        %v1166 = vpop.f32.mrb[0].mxu0
        %v1167 = vadd.f32 0.0, %v1166
        %v1168 = vpop.f32.mrb[0].mxu0
        %1169 = vmatprep.mubr.f32.mxu0 0.0
        %1170 = vmatmul.mubr.f32.gmra.mrb[0].mxu0 %v728
        %v1171 = vpop.f32.mrb[0].mxu0
        %v1172 = vadd.f32 0.0, %v1171
        %v1173 = vpop.f32.mrb[0].mxu0
        %1174 = vmatprep.mubr.f32.mxu0 0.0
        %1175 = vmatmul.mubr.f32.gmra.mrb[0].mxu0 %v730
        %v1176 = vpop.f32.mrb[0].mxu0
        %v1177 = vadd.f32 0.0, %v1176
        %v1178 = vpop.f32.mrb[0].mxu0
        %1179 = vmatprep.mubr.f32.mxu0 0.0
        %1180 = vmatmul.mubr.f32.gmra.mrb[0].mxu0 %v732
        %v1181 = vpop.f32.mrb[0].mxu0
        %v1182 = vadd.f32 0.0, %v1181
        %v1183 = vpop.f32.mrb[0].mxu0
        %1184 = vmatprep.mubr.f32.mxu0 0.0
        %1185 = vmatmul.mubr.f32.gmra.mrb[0].mxu0 %v734
        %v1186 = vpop.f32.mrb[0].mxu0
        %v1187 = vadd.f32 0.0, %v1186
        %v1188 = vpop.f32.mrb[0].mxu0
        %1189 = vmatprep.mubr.f32.mxu0 0.0
        %1190 = vmatmul.mubr.f32.gmra.mrb[0].mxu0 %v736
        %v1191 = vpop.f32.mrb[0].mxu0
        %v1192 = vadd.f32 0.0, %v1191
        %v1193 = vpop.f32.mrb[0].mxu0
        %1194 = vmatprep.mubr.f32.mxu0 0.0
        %1195 = vmatmul.mubr.f32.gmra.mrb[0].mxu0 %v738
        %v1196 = vpop.f32.mrb[0].mxu0
        %v1197 = vadd.f32 0.0, %v1196
        %v1198 = vpop.f32.mrb[0].mxu0
        %1199 = vmatprep.mubr.f32.mxu0 0.0
        %1200 = vmatmul.mubr.f32.gmra.mrb[0].mxu0 %v740
        %v1201 = vpop.f32.mrb[0].mxu0
        %v1202 = vadd.f32 0.0, %v1201
        %v1203 = vpop.f32.mrb[0].mxu0
        %1204 = vmatprep.mubr.f32.mxu0 0.0
        %1205 = vmatmul.mubr.f32.gmra.mrb[0].mxu0 %v742
        %v1206 = vpop.f32.mrb[0].mxu0
        %v1207 = vadd.f32 0.0, %v1206
        %v1208 = vpop.f32.mrb[0].mxu0
        %1209 = vmatprep.mubr.f32.mxu0 0.0
        %1210 = vmatmul.mubr.f32.gmra.mrb[0].mxu0 %v744
        %v1211 = vpop.f32.mrb[0].mxu0
        %v1212 = vadd.f32 0.0, %v1211
        %v1213 = vpop.f32.mrb[0].mxu0
        %1214 = vmatprep.mubr.f32.mxu0 0.0
        %1215 = vmatmul.mubr.f32.gmra.mrb[0].mxu0 %v746
        %v1216 = vpop.f32.mrb[0].mxu0
        %v1217 = vadd.f32 0.0, %v1216
        %v1218 = vpop.f32.mrb[0].mxu0
        %1219 = vmatprep.mubr.f32.mxu0 0.0
        %1220 = vmatmul.mubr.f32.gmra.mrb[0].mxu0 %v748
        %v1221 = vpop.f32.mrb[0].mxu0
        %v1222 = vadd.f32 0.0, %v1221
        %v1223 = vpop.f32.mrb[0].mxu0
        %1224 = vmatprep.mubr.f32.mxu0 0.0
        %1225 = vmatmul.mubr.f32.gmra.mrb[0].mxu0 %v750
        %v1226 = vpop.f32.mrb[0].mxu0
        %v1227 = vadd.f32 0.0, %v1226
        %v1228 = vpop.f32.mrb[0].mxu0
        %1229 = vmatprep.mubr.f32.mxu0 0.0
        %1230 = vmatmul.mubr.f32.gmra.mrb[0].mxu0 %v752
        %v1231 = vpop.f32.mrb[0].mxu0
        %v1232 = vadd.f32 0.0, %v1231
        %v1233 = vpop.f32.mrb[0].mxu0
        %1234 = vmatprep.mubr.f32.mxu0 0.0
        %1235 = vmatmul.mubr.f32.gmra.mrb[0].mxu0 %v1096
        %v1236 = vpop.f32.mrb[0].mxu0
        %v1237 = vadd.f32 0.0, %v1236
        %v1238 = vpop.f32.mrb[0].mxu0
        %1239 = vmatprep.mubr.f32.mxu0 0.0
        %1240 = vmatmul.mubr.f32.gmra.mrb[0].mxu0 %v1098
        %v1241 = vpop.f32.mrb[0].mxu0
        %v1242 = vadd.f32 0.0, %v1241
        %v1243 = vpop.f32.mrb[0].mxu0
        %1244 = vdwg.mxu0
        %v1245 = vadd.f32 %v1078, %v1167
        %v1246 = vadd.f32 %v1079, %v1172
        %v1247 = vadd.f32 %v1080, %v1177
        %v1248 = vadd.f32 %v1081, %v1182
        %v1249 = vadd.f32 %v1082, %v1187
        %v1250 = vadd.f32 %v1083, %v1192
        %v1251 = vadd.f32 %v1084, %v1197
        %v1252 = vadd.f32 %v1085, %v1202
        %v1253 = vadd.f32 %v1086, %v1207
        %v1254 = vadd.f32 %v1087, %v1212
        %v1255 = vadd.f32 %v1088, %v1217
        %v1256 = vadd.f32 %v1089, %v1222
        %v1257 = vadd.f32 %v1090, %v1227
        %v1258 = vadd.f32 %v1091, %v1232
        %v1259 = vadd.f32 %v1092, %v1237
        %v1260 = vadd.f32 %v1093, %v1242
        %s1261 = scalar_lea.vmem %s3, 32
        %v1262 = vld [vmem:[%s1261] sm:$0xff]
        %v1263 = vsel %vm544, %v519, 0
        %v1265 = vsel %vm544, %v521, 0
        %1267 = vmatprep.subr.mxu0 0.0
        %1268 = vmatpush1.msra.mxu0 %v1262
        %1269 = vmatprep.subr.mxu0 0.0
        %1270 = vmatpush1.msra.mxu0 0.0
        %1271 = vmatprep.subr.mxu0 0.0
        %1272 = vmatpush1.msra.mxu0 0.0
        %1273 = vmatprep.subr.mxu0 0.0
        %1274 = vmatpush1.msra.mxu0 0.0
        %1275 = vmatprep.subr.mxu0 0.0
        %1276 = vmatpush1.msra.mxu0 0.0
        %1277 = vmatprep.subr.mxu0 0.0
        %1278 = vmatpush1.msra.mxu0 0.0
        %1279 = vmatprep.subr.mxu0 0.0
        %1280 = vmatpush1.msra.mxu0 0.0
        %1281 = vmatprep.subr.mxu0 0.0
        %1282 = vmatpush1.msra.mxu0 0.0
        %1283 = vmatprep.subr.mxu0 0.0
        %1284 = vmatpush1.msra.mxu0 0.0
        %1285 = vmatprep.subr.mxu0 0.0
        %1286 = vmatpush1.msra.mxu0 0.0
        %1287 = vmatprep.subr.mxu0 0.0
        %1288 = vmatpush1.msra.mxu0 0.0
        %1289 = vmatprep.subr.mxu0 0.0
        %1290 = vmatpush1.msra.mxu0 0.0
        %1291 = vmatprep.subr.mxu0 0.0
        %1292 = vmatpush1.msra.mxu0 0.0
        %1293 = vmatprep.subr.mxu0 0.0
        %1294 = vmatpush1.msra.mxu0 0.0
        %1295 = vmatprep.subr.mxu0 0.0
        %1296 = vmatpush1.msra.mxu0 0.0
        %1297 = vmatprep.subr.mxu0 0.0
        %1298 = vmatpush1.msra.mxu0 0.0
        %1299 = vmatprep.subr.mxu0 0.0
        %1300 = vmatpush1.msra.mxu0 0.0
        %1301 = vmatprep.subr.mxu0 0.0
        %1302 = vmatpush1.msra.mxu0 0.0
        %1303 = vmatprep.subr.mxu0 0.0
        %1304 = vmatpush1.msra.mxu0 0.0
        %1305 = vmatprep.subr.mxu0 0.0
        %1306 = vmatpush1.msra.mxu0 0.0
        %1307 = vmatprep.subr.mxu0 0.0
        %1308 = vmatpush1.msra.mxu0 0.0
        %1309 = vmatprep.subr.mxu0 0.0
        %1310 = vmatpush1.msra.mxu0 0.0
        %1311 = vmatprep.subr.mxu0 0.0
        %1312 = vmatpush1.msra.mxu0 0.0
        %1313 = vmatprep.subr.mxu0 0.0
        %1314 = vmatpush1.msra.mxu0 0.0
        %1315 = vmatprep.subr.mxu0 0.0
        %1316 = vmatpush1.msra.mxu0 0.0
        %1317 = vmatprep.subr.mxu0 0.0
        %1318 = vmatpush1.msra.mxu0 0.0
        %1319 = vmatprep.subr.mxu0 0.0
        %1320 = vmatpush1.msra.mxu0 0.0
        %1321 = vmatprep.subr.mxu0 0.0
        %1322 = vmatpush1.msra.mxu0 0.0
        %1323 = vmatprep.subr.mxu0 0.0
        %1324 = vmatpush1.msra.mxu0 0.0
        %1325 = vmatprep.subr.mxu0 0.0
        %1326 = vmatpush1.msra.mxu0 0.0
        %1327 = vmatprep.subr.mxu0 0.0
        %1328 = vmatpush1.msra.mxu0 0.0
        %1329 = vmatprep.subr.mxu0 0.0
        %1330 = vmatpush1.msra.mxu0 0.0
        %1331 = vmatprep.mubr.f32.mxu0 0.0
        %1332 = vmatmul.mubr.f32.gmra.mrb[0].mxu0 %v549
        %v1333 = vpop.f32.mrb[0].mxu0
        %v1334 = vadd.f32 0.0, %v1333
        %v1335 = vpop.f32.mrb[0].mxu0
        %1336 = vmatprep.mubr.f32.mxu0 0.0
        %1337 = vmatmul.mubr.f32.gmra.mrb[0].mxu0 %v551
        %v1338 = vpop.f32.mrb[0].mxu0
        %v1339 = vadd.f32 0.0, %v1338
        %v1340 = vpop.f32.mrb[0].mxu0
        %1341 = vmatprep.mubr.f32.mxu0 0.0
        %1342 = vmatmul.mubr.f32.gmra.mrb[0].mxu0 %v553
        %v1343 = vpop.f32.mrb[0].mxu0
        %v1344 = vadd.f32 0.0, %v1343
        %v1345 = vpop.f32.mrb[0].mxu0
        %1346 = vmatprep.mubr.f32.mxu0 0.0
        %1347 = vmatmul.mubr.f32.gmra.mrb[0].mxu0 %v555
        %v1348 = vpop.f32.mrb[0].mxu0
        %v1349 = vadd.f32 0.0, %v1348
        %v1350 = vpop.f32.mrb[0].mxu0
        %1351 = vmatprep.mubr.f32.mxu0 0.0
        %1352 = vmatmul.mubr.f32.gmra.mrb[0].mxu0 %v557
        %v1353 = vpop.f32.mrb[0].mxu0
        %v1354 = vadd.f32 0.0, %v1353
        %v1355 = vpop.f32.mrb[0].mxu0
        %1356 = vmatprep.mubr.f32.mxu0 0.0
        %1357 = vmatmul.mubr.f32.gmra.mrb[0].mxu0 %v559
        %v1358 = vpop.f32.mrb[0].mxu0
        %v1359 = vadd.f32 0.0, %v1358
        %v1360 = vpop.f32.mrb[0].mxu0
        %1361 = vmatprep.mubr.f32.mxu0 0.0
        %1362 = vmatmul.mubr.f32.gmra.mrb[0].mxu0 %v561
        %v1363 = vpop.f32.mrb[0].mxu0
        %v1364 = vadd.f32 0.0, %v1363
        %v1365 = vpop.f32.mrb[0].mxu0
        %1366 = vmatprep.mubr.f32.mxu0 0.0
        %1367 = vmatmul.mubr.f32.gmra.mrb[0].mxu0 %v563
        %v1368 = vpop.f32.mrb[0].mxu0
        %v1369 = vadd.f32 0.0, %v1368
        %v1370 = vpop.f32.mrb[0].mxu0
        %1371 = vmatprep.mubr.f32.mxu0 0.0
        %1372 = vmatmul.mubr.f32.gmra.mrb[0].mxu0 %v565
        %v1373 = vpop.f32.mrb[0].mxu0
        %v1374 = vadd.f32 0.0, %v1373
        %v1375 = vpop.f32.mrb[0].mxu0
        %1376 = vmatprep.mubr.f32.mxu0 0.0
        %1377 = vmatmul.mubr.f32.gmra.mrb[0].mxu0 %v567
        %v1378 = vpop.f32.mrb[0].mxu0
        %v1379 = vadd.f32 0.0, %v1378
        %v1380 = vpop.f32.mrb[0].mxu0
        %1381 = vmatprep.mubr.f32.mxu0 0.0
        %1382 = vmatmul.mubr.f32.gmra.mrb[0].mxu0 %v569
        %v1383 = vpop.f32.mrb[0].mxu0
        %v1384 = vadd.f32 0.0, %v1383
        %v1385 = vpop.f32.mrb[0].mxu0
        %1386 = vmatprep.mubr.f32.mxu0 0.0
        %1387 = vmatmul.mubr.f32.gmra.mrb[0].mxu0 %v571
        %v1388 = vpop.f32.mrb[0].mxu0
        %v1389 = vadd.f32 0.0, %v1388
        %v1390 = vpop.f32.mrb[0].mxu0
        %1391 = vmatprep.mubr.f32.mxu0 0.0
        %1392 = vmatmul.mubr.f32.gmra.mrb[0].mxu0 %v573
        %v1393 = vpop.f32.mrb[0].mxu0
        %v1394 = vadd.f32 0.0, %v1393
        %v1395 = vpop.f32.mrb[0].mxu0
        %1396 = vmatprep.mubr.f32.mxu0 0.0
        %1397 = vmatmul.mubr.f32.gmra.mrb[0].mxu0 %v575
        %v1398 = vpop.f32.mrb[0].mxu0
        %v1399 = vadd.f32 0.0, %v1398
        %v1400 = vpop.f32.mrb[0].mxu0
        %1401 = vmatprep.mubr.f32.mxu0 0.0
        %1402 = vmatmul.mubr.f32.gmra.mrb[0].mxu0 %v1263
        %v1403 = vpop.f32.mrb[0].mxu0
        %v1404 = vadd.f32 0.0, %v1403
        %v1405 = vpop.f32.mrb[0].mxu0
        %1406 = vmatprep.mubr.f32.mxu0 0.0
        %1407 = vmatmul.mubr.f32.gmra.mrb[0].mxu0 %v1265
        %v1408 = vpop.f32.mrb[0].mxu0
        %v1409 = vadd.f32 0.0, %v1408
        %v1410 = vpop.f32.mrb[0].mxu0
        %1411 = vdwg.mxu0
        %v1412 = vadd.f32 %v1245, %v1334
        %v1413 = vadd.f32 %v1246, %v1339
        %v1414 = vadd.f32 %v1247, %v1344
        %v1415 = vadd.f32 %v1248, %v1349
        %v1416 = vadd.f32 %v1249, %v1354
        %v1417 = vadd.f32 %v1250, %v1359
        %v1418 = vadd.f32 %v1251, %v1364
        %v1419 = vadd.f32 %v1252, %v1369
        %v1420 = vadd.f32 %v1253, %v1374
        %v1421 = vadd.f32 %v1254, %v1379
        %v1422 = vadd.f32 %v1255, %v1384
        %v1423 = vadd.f32 %v1256, %v1389
        %v1424 = vadd.f32 %v1257, %v1394
        %v1425 = vadd.f32 %v1258, %v1399
        %v1426 = vadd.f32 %v1259, %v1404
        %v1427 = vadd.f32 %v1260, %v1409
        %s1428 = scalar_lea.vmem %s3, 40
        %v1429 = vld [vmem:[%s1428] sm:$0xff]
        %v1430 = vsel %vm544, %v524, 0
        %v1432 = vsel %vm544, %v526, 0
        %1434 = vmatprep.subr.mxu0 0.0
        %1435 = vmatpush1.msra.mxu0 %v1429
        %1436 = vmatprep.subr.mxu0 0.0
        %1437 = vmatpush1.msra.mxu0 0.0
        %1438 = vmatprep.subr.mxu0 0.0
        %1439 = vmatpush1.msra.mxu0 0.0
        %1440 = vmatprep.subr.mxu0 0.0
        %1441 = vmatpush1.msra.mxu0 0.0
        %1442 = vmatprep.subr.mxu0 0.0
        %1443 = vmatpush1.msra.mxu0 0.0
        %1444 = vmatprep.subr.mxu0 0.0
        %1445 = vmatpush1.msra.mxu0 0.0
        %1446 = vmatprep.subr.mxu0 0.0
        %1447 = vmatpush1.msra.mxu0 0.0
        %1448 = vmatprep.subr.mxu0 0.0
        %1449 = vmatpush1.msra.mxu0 0.0
        %1450 = vmatprep.subr.mxu0 0.0
        %1451 = vmatpush1.msra.mxu0 0.0
        %1452 = vmatprep.subr.mxu0 0.0
        %1453 = vmatpush1.msra.mxu0 0.0
        %1454 = vmatprep.subr.mxu0 0.0
        %1455 = vmatpush1.msra.mxu0 0.0
        %1456 = vmatprep.subr.mxu0 0.0
        %1457 = vmatpush1.msra.mxu0 0.0
        %1458 = vmatprep.subr.mxu0 0.0
        %1459 = vmatpush1.msra.mxu0 0.0
        %1460 = vmatprep.subr.mxu0 0.0
        %1461 = vmatpush1.msra.mxu0 0.0
        %1462 = vmatprep.subr.mxu0 0.0
        %1463 = vmatpush1.msra.mxu0 0.0
        %1464 = vmatprep.subr.mxu0 0.0
        %1465 = vmatpush1.msra.mxu0 0.0
        %1466 = vmatprep.subr.mxu0 0.0
        %1467 = vmatpush1.msra.mxu0 0.0
        %1468 = vmatprep.subr.mxu0 0.0
        %1469 = vmatpush1.msra.mxu0 0.0
        %1470 = vmatprep.subr.mxu0 0.0
        %1471 = vmatpush1.msra.mxu0 0.0
        %1472 = vmatprep.subr.mxu0 0.0
        %1473 = vmatpush1.msra.mxu0 0.0
        %1474 = vmatprep.subr.mxu0 0.0
        %1475 = vmatpush1.msra.mxu0 0.0
        %1476 = vmatprep.subr.mxu0 0.0
        %1477 = vmatpush1.msra.mxu0 0.0
        %1478 = vmatprep.subr.mxu0 0.0
        %1479 = vmatpush1.msra.mxu0 0.0
        %1480 = vmatprep.subr.mxu0 0.0
        %1481 = vmatpush1.msra.mxu0 0.0
        %1482 = vmatprep.subr.mxu0 0.0
        %1483 = vmatpush1.msra.mxu0 0.0
        %1484 = vmatprep.subr.mxu0 0.0
        %1485 = vmatpush1.msra.mxu0 0.0
        %1486 = vmatprep.subr.mxu0 0.0
        %1487 = vmatpush1.msra.mxu0 0.0
        %1488 = vmatprep.subr.mxu0 0.0
        %1489 = vmatpush1.msra.mxu0 0.0
        %1490 = vmatprep.subr.mxu0 0.0
        %1491 = vmatpush1.msra.mxu0 0.0
        %1492 = vmatprep.subr.mxu0 0.0
        %1493 = vmatpush1.msra.mxu0 0.0
        %1494 = vmatprep.subr.mxu0 0.0
        %1495 = vmatpush1.msra.mxu0 0.0
        %1496 = vmatprep.subr.mxu0 0.0
        %1497 = vmatpush1.msra.mxu0 0.0
        %1498 = vmatprep.mubr.f32.mxu0 0.0
        %1499 = vmatmul.mubr.f32.gmra.mrb[0].mxu0 %v905
        %v1500 = vpop.f32.mrb[0].mxu0
        %v1501 = vadd.f32 0.0, %v1500
        %v1502 = vpop.f32.mrb[0].mxu0
        %1503 = vmatprep.mubr.f32.mxu0 0.0
        %1504 = vmatmul.mubr.f32.gmra.mrb[0].mxu0 %v907
        %v1505 = vpop.f32.mrb[0].mxu0
        %v1506 = vadd.f32 0.0, %v1505
        %v1507 = vpop.f32.mrb[0].mxu0
        %1508 = vmatprep.mubr.f32.mxu0 0.0
        %1509 = vmatmul.mubr.f32.gmra.mrb[0].mxu0 %v909
        %v1510 = vpop.f32.mrb[0].mxu0
        %v1511 = vadd.f32 0.0, %v1510
        %v1512 = vpop.f32.mrb[0].mxu0
        %1513 = vmatprep.mubr.f32.mxu0 0.0
        %1514 = vmatmul.mubr.f32.gmra.mrb[0].mxu0 %v911
        %v1515 = vpop.f32.mrb[0].mxu0
        %v1516 = vadd.f32 0.0, %v1515
        %v1517 = vpop.f32.mrb[0].mxu0
        %1518 = vmatprep.mubr.f32.mxu0 0.0
        %1519 = vmatmul.mubr.f32.gmra.mrb[0].mxu0 %v913
        %v1520 = vpop.f32.mrb[0].mxu0
        %v1521 = vadd.f32 0.0, %v1520
        %v1522 = vpop.f32.mrb[0].mxu0
        %1523 = vmatprep.mubr.f32.mxu0 0.0
        %1524 = vmatmul.mubr.f32.gmra.mrb[0].mxu0 %v915
        %v1525 = vpop.f32.mrb[0].mxu0
        %v1526 = vadd.f32 0.0, %v1525
        %v1527 = vpop.f32.mrb[0].mxu0
        %1528 = vmatprep.mubr.f32.mxu0 0.0
        %1529 = vmatmul.mubr.f32.gmra.mrb[0].mxu0 %v917
        %v1530 = vpop.f32.mrb[0].mxu0
        %v1531 = vadd.f32 0.0, %v1530
        %v1532 = vpop.f32.mrb[0].mxu0
        %1533 = vmatprep.mubr.f32.mxu0 0.0
        %1534 = vmatmul.mubr.f32.gmra.mrb[0].mxu0 %v919
        %v1535 = vpop.f32.mrb[0].mxu0
        %v1536 = vadd.f32 0.0, %v1535
        %v1537 = vpop.f32.mrb[0].mxu0
        %1538 = vmatprep.mubr.f32.mxu0 0.0
        %1539 = vmatmul.mubr.f32.gmra.mrb[0].mxu0 %v921
        %v1540 = vpop.f32.mrb[0].mxu0
        %v1541 = vadd.f32 0.0, %v1540
        %v1542 = vpop.f32.mrb[0].mxu0
        %1543 = vmatprep.mubr.f32.mxu0 0.0
        %1544 = vmatmul.mubr.f32.gmra.mrb[0].mxu0 %v923
        %v1545 = vpop.f32.mrb[0].mxu0
        %v1546 = vadd.f32 0.0, %v1545
        %v1547 = vpop.f32.mrb[0].mxu0
        %1548 = vmatprep.mubr.f32.mxu0 0.0
        %1549 = vmatmul.mubr.f32.gmra.mrb[0].mxu0 %v925
        %v1550 = vpop.f32.mrb[0].mxu0
        %v1551 = vadd.f32 0.0, %v1550
        %v1552 = vpop.f32.mrb[0].mxu0
        %1553 = vmatprep.mubr.f32.mxu0 0.0
        %1554 = vmatmul.mubr.f32.gmra.mrb[0].mxu0 %v927
        %v1555 = vpop.f32.mrb[0].mxu0
        %v1556 = vadd.f32 0.0, %v1555
        %v1557 = vpop.f32.mrb[0].mxu0
        %1558 = vmatprep.mubr.f32.mxu0 0.0
        %1559 = vmatmul.mubr.f32.gmra.mrb[0].mxu0 %v929
        %v1560 = vpop.f32.mrb[0].mxu0
        %v1561 = vadd.f32 0.0, %v1560
        %v1562 = vpop.f32.mrb[0].mxu0
        %1563 = vmatprep.mubr.f32.mxu0 0.0
        %1564 = vmatmul.mubr.f32.gmra.mrb[0].mxu0 %v931
        %v1565 = vpop.f32.mrb[0].mxu0
        %v1566 = vadd.f32 0.0, %v1565
        %v1567 = vpop.f32.mrb[0].mxu0
        %1568 = vmatprep.mubr.f32.mxu0 0.0
        %1569 = vmatmul.mubr.f32.gmra.mrb[0].mxu0 %v1430
        %v1570 = vpop.f32.mrb[0].mxu0
        %v1571 = vadd.f32 0.0, %v1570
        %v1572 = vpop.f32.mrb[0].mxu0
        %1573 = vmatprep.mubr.f32.mxu0 0.0
        %1574 = vmatmul.mubr.f32.gmra.mrb[0].mxu0 %v1432
        %v1575 = vpop.f32.mrb[0].mxu0
        %v1576 = vadd.f32 0.0, %v1575
        %v1577 = vpop.f32.mrb[0].mxu0
        %1578 = vdwg.mxu0
        %v1579 = vadd.f32 %v1412, %v1501
        %v1580 = vadd.f32 %v1413, %v1506
        %v1581 = vadd.f32 %v1414, %v1511
        %v1582 = vadd.f32 %v1415, %v1516
        %v1583 = vadd.f32 %v1416, %v1521
        %v1584 = vadd.f32 %v1417, %v1526
        %v1585 = vadd.f32 %v1418, %v1531
        %v1586 = vadd.f32 %v1419, %v1536
        %v1587 = vadd.f32 %v1420, %v1541
        %v1588 = vadd.f32 %v1421, %v1546
        %v1589 = vadd.f32 %v1422, %v1551
        %v1590 = vadd.f32 %v1423, %v1556
        %v1591 = vadd.f32 %v1424, %v1561
        %v1592 = vadd.f32 %v1425, %v1566
        %v1593 = vadd.f32 %v1426, %v1571
        %v1594 = vadd.f32 %v1427, %v1576
        %v1596 = vlaneseq
        %v1597 = vshrl.u32 %v1596, 7
        %v1598 = vsub.s32 0, %v1597
        %v1599 = vrot.slane %v540, %v1598
        %v1601 = vadd.f32 %v1579, %v1599
        %v1602 = vadd.f32 %v1580, %v1599
        %v1603 = vadd.f32 %v1581, %v1599
        %v1604 = vadd.f32 %v1582, %v1599
        %v1605 = vadd.f32 %v1583, %v1599
        %v1606 = vadd.f32 %v1584, %v1599
        %v1607 = vadd.f32 %v1585, %v1599
        %v1608 = vadd.f32 %v1586, %v1599
        %v1609 = vadd.f32 %v1587, %v1599
        %v1610 = vadd.f32 %v1588, %v1599
        %v1611 = vadd.f32 %v1589, %v1599
        %v1612 = vadd.f32 %v1590, %v1599
        %v1613 = vadd.f32 %v1591, %v1599
        %v1614 = vadd.f32 %v1592, %v1599
        %v1615 = vadd.f32 %v1593, %v1599
        %v1616 = vadd.f32 %v1594, %v1599
        %vm1617 = vcmask 130048
        %1618 = vst.msk [vmem:[%s329] sm:$0xff] %vm1617, %v1601
        %1619 = vst.msk [vmem:[%s329 + $0x8] sm:$0xff] %vm1617, %v1602
        %1620 = vst.msk [vmem:[%s329 + $0x20] sm:$0xff] %vm1617, %v1603
        %1621 = vst.msk [vmem:[%s329 + $0x28] sm:$0xff] %vm1617, %v1604
        %1622 = vst.msk [vmem:[%s329 + $0x40] sm:$0xff] %vm1617, %v1605
        %1623 = vst.msk [vmem:[%s329 + $0x48] sm:$0xff] %vm1617, %v1606
        %1624 = vst.msk [vmem:[%s329 + $0x60] sm:$0xff] %vm1617, %v1607
        %1625 = vst.msk [vmem:[%s329 + $0x68] sm:$0xff] %vm1617, %v1608
        %1626 = vst.msk [vmem:[%s329 + $0x80] sm:$0xff] %vm1617, %v1609
        %1627 = vst.msk [vmem:[%s329 + $0x88] sm:$0xff] %vm1617, %v1610
        %1628 = vst.msk [vmem:[%s329 + $0xa0] sm:$0xff] %vm1617, %v1611
        %1629 = vst.msk [vmem:[%s329 + $0xa8] sm:$0xff] %vm1617, %v1612
        %1630 = vst.msk [vmem:[%s329 + $0xc0] sm:$0xff] %vm1617, %v1613
        %1631 = vst.msk [vmem:[%s329 + $0xc8] sm:$0xff] %vm1617, %v1614
        %1632 = vst.msk [vmem:[%s329 + $0xe0] sm:$0xff] %vm1617, %v1615
        %1633 = vst.msk [vmem:[%s329 + $0xe8] sm:$0xff] %vm1617, %v1616
        %s1634 = scalar_lea.vmem %s3, 48
        %v1635 = vld [vmem:[%s1634] sm:$0xff]
        %s1636 = scalar_lea.vmem %s3, 56
        %v1637 = vld [vmem:[%s1636] sm:$0xff]
        %1638 = vmatprep.subr.mxu0 0.0
        %1639 = vmatpush1.msra.mxu0 %v1637
        %1640 = vmatprep.subr.mxu0 0.0
        %1641 = vmatpush1.msra.mxu0 0.0
        %1642 = vmatprep.subr.mxu0 0.0
        %1643 = vmatpush1.msra.mxu0 0.0
        %1644 = vmatprep.subr.mxu0 0.0
        %1645 = vmatpush1.msra.mxu0 0.0
        %1646 = vmatprep.subr.mxu0 0.0
        %1647 = vmatpush1.msra.mxu0 0.0
        %1648 = vmatprep.subr.mxu0 0.0
        %1649 = vmatpush1.msra.mxu0 0.0
        %1650 = vmatprep.subr.mxu0 0.0
        %1651 = vmatpush1.msra.mxu0 0.0
        %1652 = vmatprep.subr.mxu0 0.0
        %1653 = vmatpush1.msra.mxu0 0.0
        %1654 = vmatprep.subr.mxu0 0.0
        %1655 = vmatpush1.msra.mxu0 0.0
        %1656 = vmatprep.subr.mxu0 0.0
        %1657 = vmatpush1.msra.mxu0 0.0
        %1658 = vmatprep.subr.mxu0 0.0
        %1659 = vmatpush1.msra.mxu0 0.0
        %1660 = vmatprep.subr.mxu0 0.0
        %1661 = vmatpush1.msra.mxu0 0.0
        %1662 = vmatprep.subr.mxu0 0.0
        %1663 = vmatpush1.msra.mxu0 0.0
        %1664 = vmatprep.subr.mxu0 0.0
        %1665 = vmatpush1.msra.mxu0 0.0
        %1666 = vmatprep.subr.mxu0 0.0
        %1667 = vmatpush1.msra.mxu0 0.0
        %1668 = vmatprep.subr.mxu0 0.0
        %1669 = vmatpush1.msra.mxu0 0.0
        %1670 = vmatprep.subr.mxu0 0.0
        %1671 = vmatpush1.msra.mxu0 0.0
        %1672 = vmatprep.subr.mxu0 0.0
        %1673 = vmatpush1.msra.mxu0 0.0
        %1674 = vmatprep.subr.mxu0 0.0
        %1675 = vmatpush1.msra.mxu0 0.0
        %1676 = vmatprep.subr.mxu0 0.0
        %1677 = vmatpush1.msra.mxu0 0.0
        %1678 = vmatprep.subr.mxu0 0.0
        %1679 = vmatpush1.msra.mxu0 0.0
        %1680 = vmatprep.subr.mxu0 0.0
        %1681 = vmatpush1.msra.mxu0 0.0
        %1682 = vmatprep.subr.mxu0 0.0
        %1683 = vmatpush1.msra.mxu0 0.0
        %1684 = vmatprep.subr.mxu0 0.0
        %1685 = vmatpush1.msra.mxu0 0.0
        %1686 = vmatprep.subr.mxu0 0.0
        %1687 = vmatpush1.msra.mxu0 0.0
        %1688 = vmatprep.subr.mxu0 0.0
        %1689 = vmatpush1.msra.mxu0 0.0
        %1690 = vmatprep.subr.mxu0 0.0
        %1691 = vmatpush1.msra.mxu0 0.0
        %1692 = vmatprep.subr.mxu0 0.0
        %1693 = vmatpush1.msra.mxu0 0.0
        %1694 = vmatprep.subr.mxu0 0.0
        %1695 = vmatpush1.msra.mxu0 0.0
        %1696 = vmatprep.subr.mxu0 0.0
        %1697 = vmatpush1.msra.mxu0 0.0
        %1698 = vmatprep.subr.mxu0 0.0
        %1699 = vmatpush1.msra.mxu0 0.0
        %1700 = vmatprep.subr.mxu0 0.0
        %1701 = vmatpush1.msra.mxu0 0.0
        %1702 = vmatprep.mubr.f32.mxu0 0.0
        %1703 = vmatmul.mubr.f32.gmra.mrb[0].mxu0 %v549
        %v1704 = vpop.f32.mrb[0].mxu0
        %v1705 = vadd.f32 0.0, %v1704
        %v1706 = vpop.f32.mrb[0].mxu0
        %1707 = vmatprep.mubr.f32.mxu0 0.0
        %1708 = vmatmul.mubr.f32.gmra.mrb[0].mxu0 %v551
        %v1709 = vpop.f32.mrb[0].mxu0
        %v1710 = vadd.f32 0.0, %v1709
        %v1711 = vpop.f32.mrb[0].mxu0
        %1712 = vmatprep.mubr.f32.mxu0 0.0
        %1713 = vmatmul.mubr.f32.gmra.mrb[0].mxu0 %v553
        %v1714 = vpop.f32.mrb[0].mxu0
        %v1715 = vadd.f32 0.0, %v1714
        %v1716 = vpop.f32.mrb[0].mxu0
        %1717 = vmatprep.mubr.f32.mxu0 0.0
        %1718 = vmatmul.mubr.f32.gmra.mrb[0].mxu0 %v555
        %v1719 = vpop.f32.mrb[0].mxu0
        %v1720 = vadd.f32 0.0, %v1719
        %v1721 = vpop.f32.mrb[0].mxu0
        %1722 = vmatprep.mubr.f32.mxu0 0.0
        %1723 = vmatmul.mubr.f32.gmra.mrb[0].mxu0 %v557
        %v1724 = vpop.f32.mrb[0].mxu0
        %v1725 = vadd.f32 0.0, %v1724
        %v1726 = vpop.f32.mrb[0].mxu0
        %1727 = vmatprep.mubr.f32.mxu0 0.0
        %1728 = vmatmul.mubr.f32.gmra.mrb[0].mxu0 %v559
        %v1729 = vpop.f32.mrb[0].mxu0
        %v1730 = vadd.f32 0.0, %v1729
        %v1731 = vpop.f32.mrb[0].mxu0
        %1732 = vmatprep.mubr.f32.mxu0 0.0
        %1733 = vmatmul.mubr.f32.gmra.mrb[0].mxu0 %v561
        %v1734 = vpop.f32.mrb[0].mxu0
        %v1735 = vadd.f32 0.0, %v1734
        %v1736 = vpop.f32.mrb[0].mxu0
        %1737 = vmatprep.mubr.f32.mxu0 0.0
        %1738 = vmatmul.mubr.f32.gmra.mrb[0].mxu0 %v563
        %v1739 = vpop.f32.mrb[0].mxu0
        %v1740 = vadd.f32 0.0, %v1739
        %v1741 = vpop.f32.mrb[0].mxu0
        %1742 = vmatprep.mubr.f32.mxu0 0.0
        %1743 = vmatmul.mubr.f32.gmra.mrb[0].mxu0 %v565
        %v1744 = vpop.f32.mrb[0].mxu0
        %v1745 = vadd.f32 0.0, %v1744
        %v1746 = vpop.f32.mrb[0].mxu0
        %1747 = vmatprep.mubr.f32.mxu0 0.0
        %1748 = vmatmul.mubr.f32.gmra.mrb[0].mxu0 %v567
        %v1749 = vpop.f32.mrb[0].mxu0
        %v1750 = vadd.f32 0.0, %v1749
        %v1751 = vpop.f32.mrb[0].mxu0
        %1752 = vmatprep.mubr.f32.mxu0 0.0
        %1753 = vmatmul.mubr.f32.gmra.mrb[0].mxu0 %v569
        %v1754 = vpop.f32.mrb[0].mxu0
        %v1755 = vadd.f32 0.0, %v1754
        %v1756 = vpop.f32.mrb[0].mxu0
        %1757 = vmatprep.mubr.f32.mxu0 0.0
        %1758 = vmatmul.mubr.f32.gmra.mrb[0].mxu0 %v571
        %v1759 = vpop.f32.mrb[0].mxu0
        %v1760 = vadd.f32 0.0, %v1759
        %v1761 = vpop.f32.mrb[0].mxu0
        %1762 = vmatprep.mubr.f32.mxu0 0.0
        %1763 = vmatmul.mubr.f32.gmra.mrb[0].mxu0 %v573
        %v1764 = vpop.f32.mrb[0].mxu0
        %v1765 = vadd.f32 0.0, %v1764
        %v1766 = vpop.f32.mrb[0].mxu0
        %1767 = vmatprep.mubr.f32.mxu0 0.0
        %1768 = vmatmul.mubr.f32.gmra.mrb[0].mxu0 %v575
        %v1769 = vpop.f32.mrb[0].mxu0
        %v1770 = vadd.f32 0.0, %v1769
        %v1771 = vpop.f32.mrb[0].mxu0
        %1772 = vmatprep.mubr.f32.mxu0 0.0
        %1773 = vmatmul.mubr.f32.gmra.mrb[0].mxu0 %v1263
        %v1774 = vpop.f32.mrb[0].mxu0
        %v1775 = vadd.f32 0.0, %v1774
        %v1776 = vpop.f32.mrb[0].mxu0
        %1777 = vmatprep.mubr.f32.mxu0 0.0
        %1778 = vmatmul.mubr.f32.gmra.mrb[0].mxu0 %v1265
        %v1779 = vpop.f32.mrb[0].mxu0
        %v1780 = vadd.f32 0.0, %v1779
        %v1781 = vpop.f32.mrb[0].mxu0
        %1782 = vdwg.mxu0
        %1783 = vmatprep.subr.mxu0 0.0
        %1784 = vmatpush1.msra.mxu0 %v1635
        %1785 = vmatprep.subr.mxu0 0.0
        %1786 = vmatpush1.msra.mxu0 0.0
        %1787 = vmatprep.subr.mxu0 0.0
        %1788 = vmatpush1.msra.mxu0 0.0
        %1789 = vmatprep.subr.mxu0 0.0
        %1790 = vmatpush1.msra.mxu0 0.0
        %1791 = vmatprep.subr.mxu0 0.0
        %1792 = vmatpush1.msra.mxu0 0.0
        %1793 = vmatprep.subr.mxu0 0.0
        %1794 = vmatpush1.msra.mxu0 0.0
        %1795 = vmatprep.subr.mxu0 0.0
        %1796 = vmatpush1.msra.mxu0 0.0
        %1797 = vmatprep.subr.mxu0 0.0
        %1798 = vmatpush1.msra.mxu0 0.0
        %1799 = vmatprep.subr.mxu0 0.0
        %1800 = vmatpush1.msra.mxu0 0.0
        %1801 = vmatprep.subr.mxu0 0.0
        %1802 = vmatpush1.msra.mxu0 0.0
        %1803 = vmatprep.subr.mxu0 0.0
        %1804 = vmatpush1.msra.mxu0 0.0
        %1805 = vmatprep.subr.mxu0 0.0
        %1806 = vmatpush1.msra.mxu0 0.0
        %1807 = vmatprep.subr.mxu0 0.0
        %1808 = vmatpush1.msra.mxu0 0.0
        %1809 = vmatprep.subr.mxu0 0.0
        %1810 = vmatpush1.msra.mxu0 0.0
        %1811 = vmatprep.subr.mxu0 0.0
        %1812 = vmatpush1.msra.mxu0 0.0
        %1813 = vmatprep.subr.mxu0 0.0
        %1814 = vmatpush1.msra.mxu0 0.0
        %1815 = vmatprep.subr.mxu0 0.0
        %1816 = vmatpush1.msra.mxu0 0.0
        %1817 = vmatprep.subr.mxu0 0.0
        %1818 = vmatpush1.msra.mxu0 0.0
        %1819 = vmatprep.subr.mxu0 0.0
        %1820 = vmatpush1.msra.mxu0 0.0
        %1821 = vmatprep.subr.mxu0 0.0
        %1822 = vmatpush1.msra.mxu0 0.0
        %1823 = vmatprep.subr.mxu0 0.0
        %1824 = vmatpush1.msra.mxu0 0.0
        %1825 = vmatprep.subr.mxu0 0.0
        %1826 = vmatpush1.msra.mxu0 0.0
        %1827 = vmatprep.subr.mxu0 0.0
        %1828 = vmatpush1.msra.mxu0 0.0
        %1829 = vmatprep.subr.mxu0 0.0
        %1830 = vmatpush1.msra.mxu0 0.0
        %1831 = vmatprep.subr.mxu0 0.0
        %1832 = vmatpush1.msra.mxu0 0.0
        %1833 = vmatprep.subr.mxu0 0.0
        %1834 = vmatpush1.msra.mxu0 0.0
        %1835 = vmatprep.subr.mxu0 0.0
        %1836 = vmatpush1.msra.mxu0 0.0
        %1837 = vmatprep.subr.mxu0 0.0
        %1838 = vmatpush1.msra.mxu0 0.0
        %1839 = vmatprep.subr.mxu0 0.0
        %1840 = vmatpush1.msra.mxu0 0.0
        %1841 = vmatprep.subr.mxu0 0.0
        %1842 = vmatpush1.msra.mxu0 0.0
        %1843 = vmatprep.subr.mxu0 0.0
        %1844 = vmatpush1.msra.mxu0 0.0
        %1845 = vmatprep.subr.mxu0 0.0
        %1846 = vmatpush1.msra.mxu0 0.0
        %1847 = vmatprep.mubr.f32.mxu0 0.0
        %1848 = vmatmul.mubr.f32.gmra.mrb[0].mxu0 %v726
        %v1849 = vpop.f32.mrb[0].mxu0
        %v1850 = vadd.f32 %v1705, %v1849
        %v1851 = vpop.f32.mrb[0].mxu0
        %1852 = vmatprep.mubr.f32.mxu0 0.0
        %1853 = vmatmul.mubr.f32.gmra.mrb[0].mxu0 %v728
        %v1854 = vpop.f32.mrb[0].mxu0
        %v1855 = vadd.f32 %v1710, %v1854
        %v1856 = vpop.f32.mrb[0].mxu0
        %1857 = vmatprep.mubr.f32.mxu0 0.0
        %1858 = vmatmul.mubr.f32.gmra.mrb[0].mxu0 %v730
        %v1859 = vpop.f32.mrb[0].mxu0
        %v1860 = vadd.f32 %v1715, %v1859
        %v1861 = vpop.f32.mrb[0].mxu0
        %1862 = vmatprep.mubr.f32.mxu0 0.0
        %1863 = vmatmul.mubr.f32.gmra.mrb[0].mxu0 %v732
        %v1864 = vpop.f32.mrb[0].mxu0
        %v1865 = vadd.f32 %v1720, %v1864
        %v1866 = vpop.f32.mrb[0].mxu0
        %1867 = vmatprep.mubr.f32.mxu0 0.0
        %1868 = vmatmul.mubr.f32.gmra.mrb[0].mxu0 %v734
        %v1869 = vpop.f32.mrb[0].mxu0
        %v1870 = vadd.f32 %v1725, %v1869
        %v1871 = vpop.f32.mrb[0].mxu0
        %1872 = vmatprep.mubr.f32.mxu0 0.0
        %1873 = vmatmul.mubr.f32.gmra.mrb[0].mxu0 %v736
        %v1874 = vpop.f32.mrb[0].mxu0
        %v1875 = vadd.f32 %v1730, %v1874
        %v1876 = vpop.f32.mrb[0].mxu0
        %1877 = vmatprep.mubr.f32.mxu0 0.0
        %1878 = vmatmul.mubr.f32.gmra.mrb[0].mxu0 %v738
        %v1879 = vpop.f32.mrb[0].mxu0
        %v1880 = vadd.f32 %v1735, %v1879
        %v1881 = vpop.f32.mrb[0].mxu0
        %1882 = vmatprep.mubr.f32.mxu0 0.0
        %1883 = vmatmul.mubr.f32.gmra.mrb[0].mxu0 %v740
        %v1884 = vpop.f32.mrb[0].mxu0
        %v1885 = vadd.f32 %v1740, %v1884
        %v1886 = vpop.f32.mrb[0].mxu0
        %1887 = vmatprep.mubr.f32.mxu0 0.0
        %1888 = vmatmul.mubr.f32.gmra.mrb[0].mxu0 %v742
        %v1889 = vpop.f32.mrb[0].mxu0
        %v1890 = vadd.f32 %v1745, %v1889
        %v1891 = vpop.f32.mrb[0].mxu0
        %1892 = vmatprep.mubr.f32.mxu0 0.0
        %1893 = vmatmul.mubr.f32.gmra.mrb[0].mxu0 %v744
        %v1894 = vpop.f32.mrb[0].mxu0
        %v1895 = vadd.f32 %v1750, %v1894
        %v1896 = vpop.f32.mrb[0].mxu0
        %1897 = vmatprep.mubr.f32.mxu0 0.0
        %1898 = vmatmul.mubr.f32.gmra.mrb[0].mxu0 %v746
        %v1899 = vpop.f32.mrb[0].mxu0
        %v1900 = vadd.f32 %v1755, %v1899
        %v1901 = vpop.f32.mrb[0].mxu0
        %1902 = vmatprep.mubr.f32.mxu0 0.0
        %1903 = vmatmul.mubr.f32.gmra.mrb[0].mxu0 %v748
        %v1904 = vpop.f32.mrb[0].mxu0
        %v1905 = vadd.f32 %v1760, %v1904
        %v1906 = vpop.f32.mrb[0].mxu0
        %1907 = vmatprep.mubr.f32.mxu0 0.0
        %1908 = vmatmul.mubr.f32.gmra.mrb[0].mxu0 %v750
        %v1909 = vpop.f32.mrb[0].mxu0
        %v1910 = vadd.f32 %v1765, %v1909
        %v1911 = vpop.f32.mrb[0].mxu0
        %1912 = vmatprep.mubr.f32.mxu0 0.0
        %1913 = vmatmul.mubr.f32.gmra.mrb[0].mxu0 %v752
        %v1914 = vpop.f32.mrb[0].mxu0
        %v1915 = vadd.f32 %v1770, %v1914
        %v1916 = vpop.f32.mrb[0].mxu0
        %1917 = vmatprep.mubr.f32.mxu0 0.0
        %1918 = vmatmul.mubr.f32.gmra.mrb[0].mxu0 %v1096
        %v1919 = vpop.f32.mrb[0].mxu0
        %v1920 = vadd.f32 %v1775, %v1919
        %v1921 = vpop.f32.mrb[0].mxu0
        %1922 = vmatprep.mubr.f32.mxu0 0.0
        %1923 = vmatmul.mubr.f32.gmra.mrb[0].mxu0 %v1098
        %v1924 = vpop.f32.mrb[0].mxu0
        %v1925 = vadd.f32 %v1780, %v1924
        %v1926 = vpop.f32.mrb[0].mxu0
        %1927 = vdwg.mxu0
        %s1928 = scalar_lea.vmem %s3, 64
        %v1929 = vld [vmem:[%s1928] sm:$0xff]
        %1930 = vmatprep.subr.mxu0 0.0
        %1931 = vmatpush1.msra.mxu0 %v1929
        %1932 = vmatprep.subr.mxu0 0.0
        %1933 = vmatpush1.msra.mxu0 0.0
        %1934 = vmatprep.subr.mxu0 0.0
        %1935 = vmatpush1.msra.mxu0 0.0
        %1936 = vmatprep.subr.mxu0 0.0
        %1937 = vmatpush1.msra.mxu0 0.0
        %1938 = vmatprep.subr.mxu0 0.0
        %1939 = vmatpush1.msra.mxu0 0.0
        %1940 = vmatprep.subr.mxu0 0.0
        %1941 = vmatpush1.msra.mxu0 0.0
        %1942 = vmatprep.subr.mxu0 0.0
        %1943 = vmatpush1.msra.mxu0 0.0
        %1944 = vmatprep.subr.mxu0 0.0
        %1945 = vmatpush1.msra.mxu0 0.0
        %1946 = vmatprep.subr.mxu0 0.0
        %1947 = vmatpush1.msra.mxu0 0.0
        %1948 = vmatprep.subr.mxu0 0.0
        %1949 = vmatpush1.msra.mxu0 0.0
        %1950 = vmatprep.subr.mxu0 0.0
        %1951 = vmatpush1.msra.mxu0 0.0
        %1952 = vmatprep.subr.mxu0 0.0
        %1953 = vmatpush1.msra.mxu0 0.0
        %1954 = vmatprep.subr.mxu0 0.0
        %1955 = vmatpush1.msra.mxu0 0.0
        %1956 = vmatprep.subr.mxu0 0.0
        %1957 = vmatpush1.msra.mxu0 0.0
        %1958 = vmatprep.subr.mxu0 0.0
        %1959 = vmatpush1.msra.mxu0 0.0
        %1960 = vmatprep.subr.mxu0 0.0
        %1961 = vmatpush1.msra.mxu0 0.0
        %1962 = vmatprep.subr.mxu0 0.0
        %1963 = vmatpush1.msra.mxu0 0.0
        %1964 = vmatprep.subr.mxu0 0.0
        %1965 = vmatpush1.msra.mxu0 0.0
        %1966 = vmatprep.subr.mxu0 0.0
        %1967 = vmatpush1.msra.mxu0 0.0
        %1968 = vmatprep.subr.mxu0 0.0
        %1969 = vmatpush1.msra.mxu0 0.0
        %1970 = vmatprep.subr.mxu0 0.0
        %1971 = vmatpush1.msra.mxu0 0.0
        %1972 = vmatprep.subr.mxu0 0.0
        %1973 = vmatpush1.msra.mxu0 0.0
        %1974 = vmatprep.subr.mxu0 0.0
        %1975 = vmatpush1.msra.mxu0 0.0
        %1976 = vmatprep.subr.mxu0 0.0
        %1977 = vmatpush1.msra.mxu0 0.0
        %1978 = vmatprep.subr.mxu0 0.0
        %1979 = vmatpush1.msra.mxu0 0.0
        %1980 = vmatprep.subr.mxu0 0.0
        %1981 = vmatpush1.msra.mxu0 0.0
        %1982 = vmatprep.subr.mxu0 0.0
        %1983 = vmatpush1.msra.mxu0 0.0
        %1984 = vmatprep.subr.mxu0 0.0
        %1985 = vmatpush1.msra.mxu0 0.0
        %1986 = vmatprep.subr.mxu0 0.0
        %1987 = vmatpush1.msra.mxu0 0.0
        %1988 = vmatprep.subr.mxu0 0.0
        %1989 = vmatpush1.msra.mxu0 0.0
        %1990 = vmatprep.subr.mxu0 0.0
        %1991 = vmatpush1.msra.mxu0 0.0
        %1992 = vmatprep.subr.mxu0 0.0
        %1993 = vmatpush1.msra.mxu0 0.0
        %1994 = vmatprep.mubr.f32.mxu0 0.0
        %1995 = vmatmul.mubr.f32.gmra.mrb[0].mxu0 %v905
        %v1996 = vpop.f32.mrb[0].mxu0
        %v1997 = vadd.f32 0.0, %v1996
        %v1998 = vpop.f32.mrb[0].mxu0
        %1999 = vmatprep.mubr.f32.mxu0 0.0
        %2000 = vmatmul.mubr.f32.gmra.mrb[0].mxu0 %v907
        %v2001 = vpop.f32.mrb[0].mxu0
        %v2002 = vadd.f32 0.0, %v2001
        %v2003 = vpop.f32.mrb[0].mxu0
        %2004 = vmatprep.mubr.f32.mxu0 0.0
        %2005 = vmatmul.mubr.f32.gmra.mrb[0].mxu0 %v909
        %v2006 = vpop.f32.mrb[0].mxu0
        %v2007 = vadd.f32 0.0, %v2006
        %v2008 = vpop.f32.mrb[0].mxu0
        %2009 = vmatprep.mubr.f32.mxu0 0.0
        %2010 = vmatmul.mubr.f32.gmra.mrb[0].mxu0 %v911
        %v2011 = vpop.f32.mrb[0].mxu0
        %v2012 = vadd.f32 0.0, %v2011
        %v2013 = vpop.f32.mrb[0].mxu0
        %2014 = vmatprep.mubr.f32.mxu0 0.0
        %2015 = vmatmul.mubr.f32.gmra.mrb[0].mxu0 %v913
        %v2016 = vpop.f32.mrb[0].mxu0
        %v2017 = vadd.f32 0.0, %v2016
        %v2018 = vpop.f32.mrb[0].mxu0
        %2019 = vmatprep.mubr.f32.mxu0 0.0
        %2020 = vmatmul.mubr.f32.gmra.mrb[0].mxu0 %v915
        %v2021 = vpop.f32.mrb[0].mxu0
        %v2022 = vadd.f32 0.0, %v2021
        %v2023 = vpop.f32.mrb[0].mxu0
        %2024 = vmatprep.mubr.f32.mxu0 0.0
        %2025 = vmatmul.mubr.f32.gmra.mrb[0].mxu0 %v917
        %v2026 = vpop.f32.mrb[0].mxu0
        %v2027 = vadd.f32 0.0, %v2026
        %v2028 = vpop.f32.mrb[0].mxu0
        %2029 = vmatprep.mubr.f32.mxu0 0.0
        %2030 = vmatmul.mubr.f32.gmra.mrb[0].mxu0 %v919
        %v2031 = vpop.f32.mrb[0].mxu0
        %v2032 = vadd.f32 0.0, %v2031
        %v2033 = vpop.f32.mrb[0].mxu0
        %2034 = vmatprep.mubr.f32.mxu0 0.0
        %2035 = vmatmul.mubr.f32.gmra.mrb[0].mxu0 %v921
        %v2036 = vpop.f32.mrb[0].mxu0
        %v2037 = vadd.f32 0.0, %v2036
        %v2038 = vpop.f32.mrb[0].mxu0
        %2039 = vmatprep.mubr.f32.mxu0 0.0
        %2040 = vmatmul.mubr.f32.gmra.mrb[0].mxu0 %v923
        %v2041 = vpop.f32.mrb[0].mxu0
        %v2042 = vadd.f32 0.0, %v2041
        %v2043 = vpop.f32.mrb[0].mxu0
        %2044 = vmatprep.mubr.f32.mxu0 0.0
        %2045 = vmatmul.mubr.f32.gmra.mrb[0].mxu0 %v925
        %v2046 = vpop.f32.mrb[0].mxu0
        %v2047 = vadd.f32 0.0, %v2046
        %v2048 = vpop.f32.mrb[0].mxu0
        %2049 = vmatprep.mubr.f32.mxu0 0.0
        %2050 = vmatmul.mubr.f32.gmra.mrb[0].mxu0 %v927
        %v2051 = vpop.f32.mrb[0].mxu0
        %v2052 = vadd.f32 0.0, %v2051
        %v2053 = vpop.f32.mrb[0].mxu0
        %2054 = vmatprep.mubr.f32.mxu0 0.0
        %2055 = vmatmul.mubr.f32.gmra.mrb[0].mxu0 %v929
        %v2056 = vpop.f32.mrb[0].mxu0
        %v2057 = vadd.f32 0.0, %v2056
        %v2058 = vpop.f32.mrb[0].mxu0
        %2059 = vmatprep.mubr.f32.mxu0 0.0
        %2060 = vmatmul.mubr.f32.gmra.mrb[0].mxu0 %v931
        %v2061 = vpop.f32.mrb[0].mxu0
        %v2062 = vadd.f32 0.0, %v2061
        %v2063 = vpop.f32.mrb[0].mxu0
        %2064 = vmatprep.mubr.f32.mxu0 0.0
        %2065 = vmatmul.mubr.f32.gmra.mrb[0].mxu0 %v1430
        %v2066 = vpop.f32.mrb[0].mxu0
        %v2067 = vadd.f32 0.0, %v2066
        %v2068 = vpop.f32.mrb[0].mxu0
        %2069 = vmatprep.mubr.f32.mxu0 0.0
        %2070 = vmatmul.mubr.f32.gmra.mrb[0].mxu0 %v1432
        %v2071 = vpop.f32.mrb[0].mxu0
        %v2072 = vadd.f32 0.0, %v2071
        %v2073 = vpop.f32.mrb[0].mxu0
        %2074 = vdwg.mxu0
        %v2075 = vadd.f32 %v1850, %v1997
        %v2076 = vadd.f32 %v1855, %v2002
        %v2077 = vadd.f32 %v1860, %v2007
        %v2078 = vadd.f32 %v1865, %v2012
        %v2079 = vadd.f32 %v1870, %v2017
        %v2080 = vadd.f32 %v1875, %v2022
        %v2081 = vadd.f32 %v1880, %v2027
        %v2082 = vadd.f32 %v1885, %v2032
        %v2083 = vadd.f32 %v1890, %v2037
        %v2084 = vadd.f32 %v1895, %v2042
        %v2085 = vadd.f32 %v1900, %v2047
        %v2086 = vadd.f32 %v1905, %v2052
        %v2087 = vadd.f32 %v1910, %v2057
        %v2088 = vadd.f32 %v1915, %v2062
        %v2089 = vadd.f32 %v1920, %v2067
        %v2090 = vadd.f32 %v1925, %v2072
        %s2091 = scalar_lea.vmem %s3, 72
        %v2092 = vld [vmem:[%s2091] sm:$0xff]
        %v2093 = vsel %vm544, %v405, 0
        %v2095 = vsel %vm544, %v406, 0
        %2097 = vmatprep.subr.mxu0 0.0
        %2098 = vmatpush1.msra.mxu0 %v2092
        %2099 = vmatprep.subr.mxu0 0.0
        %2100 = vmatpush1.msra.mxu0 0.0
        %2101 = vmatprep.subr.mxu0 0.0
        %2102 = vmatpush1.msra.mxu0 0.0
        %2103 = vmatprep.subr.mxu0 0.0
        %2104 = vmatpush1.msra.mxu0 0.0
        %2105 = vmatprep.subr.mxu0 0.0
        %2106 = vmatpush1.msra.mxu0 0.0
        %2107 = vmatprep.subr.mxu0 0.0
        %2108 = vmatpush1.msra.mxu0 0.0
        %2109 = vmatprep.subr.mxu0 0.0
        %2110 = vmatpush1.msra.mxu0 0.0
        %2111 = vmatprep.subr.mxu0 0.0
        %2112 = vmatpush1.msra.mxu0 0.0
        %2113 = vmatprep.subr.mxu0 0.0
        %2114 = vmatpush1.msra.mxu0 0.0
        %2115 = vmatprep.subr.mxu0 0.0
        %2116 = vmatpush1.msra.mxu0 0.0
        %2117 = vmatprep.subr.mxu0 0.0
        %2118 = vmatpush1.msra.mxu0 0.0
        %2119 = vmatprep.subr.mxu0 0.0
        %2120 = vmatpush1.msra.mxu0 0.0
        %2121 = vmatprep.subr.mxu0 0.0
        %2122 = vmatpush1.msra.mxu0 0.0
        %2123 = vmatprep.subr.mxu0 0.0
        %2124 = vmatpush1.msra.mxu0 0.0
        %2125 = vmatprep.subr.mxu0 0.0
        %2126 = vmatpush1.msra.mxu0 0.0
        %2127 = vmatprep.subr.mxu0 0.0
        %2128 = vmatpush1.msra.mxu0 0.0
        %2129 = vmatprep.subr.mxu0 0.0
        %2130 = vmatpush1.msra.mxu0 0.0
        %2131 = vmatprep.subr.mxu0 0.0
        %2132 = vmatpush1.msra.mxu0 0.0
        %2133 = vmatprep.subr.mxu0 0.0
        %2134 = vmatpush1.msra.mxu0 0.0
        %2135 = vmatprep.subr.mxu0 0.0
        %2136 = vmatpush1.msra.mxu0 0.0
        %2137 = vmatprep.subr.mxu0 0.0
        %2138 = vmatpush1.msra.mxu0 0.0
        %2139 = vmatprep.subr.mxu0 0.0
        %2140 = vmatpush1.msra.mxu0 0.0
        %2141 = vmatprep.subr.mxu0 0.0
        %2142 = vmatpush1.msra.mxu0 0.0
        %2143 = vmatprep.subr.mxu0 0.0
        %2144 = vmatpush1.msra.mxu0 0.0
        %2145 = vmatprep.subr.mxu0 0.0
        %2146 = vmatpush1.msra.mxu0 0.0
        %2147 = vmatprep.subr.mxu0 0.0
        %2148 = vmatpush1.msra.mxu0 0.0
        %2149 = vmatprep.subr.mxu0 0.0
        %2150 = vmatpush1.msra.mxu0 0.0
        %2151 = vmatprep.subr.mxu0 0.0
        %2152 = vmatpush1.msra.mxu0 0.0
        %2153 = vmatprep.subr.mxu0 0.0
        %2154 = vmatpush1.msra.mxu0 0.0
        %2155 = vmatprep.subr.mxu0 0.0
        %2156 = vmatpush1.msra.mxu0 0.0
        %2157 = vmatprep.subr.mxu0 0.0
        %2158 = vmatpush1.msra.mxu0 0.0
        %2159 = vmatprep.subr.mxu0 0.0
        %2160 = vmatpush1.msra.mxu0 0.0
        %2161 = vmatprep.mubr.f32.mxu0 0.0
        %2162 = vmatmul.mubr.f32.gmra.mrb[0].mxu0 %v730
        %v2163 = vpop.f32.mrb[0].mxu0
        %v2164 = vadd.f32 0.0, %v2163
        %v2165 = vpop.f32.mrb[0].mxu0
        %2166 = vmatprep.mubr.f32.mxu0 0.0
        %2167 = vmatmul.mubr.f32.gmra.mrb[0].mxu0 %v732
        %v2168 = vpop.f32.mrb[0].mxu0
        %v2169 = vadd.f32 0.0, %v2168
        %v2170 = vpop.f32.mrb[0].mxu0
        %2171 = vmatprep.mubr.f32.mxu0 0.0
        %2172 = vmatmul.mubr.f32.gmra.mrb[0].mxu0 %v734
        %v2173 = vpop.f32.mrb[0].mxu0
        %v2174 = vadd.f32 0.0, %v2173
        %v2175 = vpop.f32.mrb[0].mxu0
        %2176 = vmatprep.mubr.f32.mxu0 0.0
        %2177 = vmatmul.mubr.f32.gmra.mrb[0].mxu0 %v736
        %v2178 = vpop.f32.mrb[0].mxu0
        %v2179 = vadd.f32 0.0, %v2178
        %v2180 = vpop.f32.mrb[0].mxu0
        %2181 = vmatprep.mubr.f32.mxu0 0.0
        %2182 = vmatmul.mubr.f32.gmra.mrb[0].mxu0 %v738
        %v2183 = vpop.f32.mrb[0].mxu0
        %v2184 = vadd.f32 0.0, %v2183
        %v2185 = vpop.f32.mrb[0].mxu0
        %2186 = vmatprep.mubr.f32.mxu0 0.0
        %2187 = vmatmul.mubr.f32.gmra.mrb[0].mxu0 %v740
        %v2188 = vpop.f32.mrb[0].mxu0
        %v2189 = vadd.f32 0.0, %v2188
        %v2190 = vpop.f32.mrb[0].mxu0
        %2191 = vmatprep.mubr.f32.mxu0 0.0
        %2192 = vmatmul.mubr.f32.gmra.mrb[0].mxu0 %v742
        %v2193 = vpop.f32.mrb[0].mxu0
        %v2194 = vadd.f32 0.0, %v2193
        %v2195 = vpop.f32.mrb[0].mxu0
        %2196 = vmatprep.mubr.f32.mxu0 0.0
        %2197 = vmatmul.mubr.f32.gmra.mrb[0].mxu0 %v744
        %v2198 = vpop.f32.mrb[0].mxu0
        %v2199 = vadd.f32 0.0, %v2198
        %v2200 = vpop.f32.mrb[0].mxu0
        %2201 = vmatprep.mubr.f32.mxu0 0.0
        %2202 = vmatmul.mubr.f32.gmra.mrb[0].mxu0 %v746
        %v2203 = vpop.f32.mrb[0].mxu0
        %v2204 = vadd.f32 0.0, %v2203
        %v2205 = vpop.f32.mrb[0].mxu0
        %2206 = vmatprep.mubr.f32.mxu0 0.0
        %2207 = vmatmul.mubr.f32.gmra.mrb[0].mxu0 %v748
        %v2208 = vpop.f32.mrb[0].mxu0
        %v2209 = vadd.f32 0.0, %v2208
        %v2210 = vpop.f32.mrb[0].mxu0
        %2211 = vmatprep.mubr.f32.mxu0 0.0
        %2212 = vmatmul.mubr.f32.gmra.mrb[0].mxu0 %v750
        %v2213 = vpop.f32.mrb[0].mxu0
        %v2214 = vadd.f32 0.0, %v2213
        %v2215 = vpop.f32.mrb[0].mxu0
        %2216 = vmatprep.mubr.f32.mxu0 0.0
        %2217 = vmatmul.mubr.f32.gmra.mrb[0].mxu0 %v752
        %v2218 = vpop.f32.mrb[0].mxu0
        %v2219 = vadd.f32 0.0, %v2218
        %v2220 = vpop.f32.mrb[0].mxu0
        %2221 = vmatprep.mubr.f32.mxu0 0.0
        %2222 = vmatmul.mubr.f32.gmra.mrb[0].mxu0 %v1096
        %v2223 = vpop.f32.mrb[0].mxu0
        %v2224 = vadd.f32 0.0, %v2223
        %v2225 = vpop.f32.mrb[0].mxu0
        %2226 = vmatprep.mubr.f32.mxu0 0.0
        %2227 = vmatmul.mubr.f32.gmra.mrb[0].mxu0 %v1098
        %v2228 = vpop.f32.mrb[0].mxu0
        %v2229 = vadd.f32 0.0, %v2228
        %v2230 = vpop.f32.mrb[0].mxu0
        %2231 = vmatprep.mubr.f32.mxu0 0.0
        %2232 = vmatmul.mubr.f32.gmra.mrb[0].mxu0 %v2093
        %v2233 = vpop.f32.mrb[0].mxu0
        %v2234 = vadd.f32 0.0, %v2233
        %v2235 = vpop.f32.mrb[0].mxu0
        %2236 = vmatprep.mubr.f32.mxu0 0.0
        %2237 = vmatmul.mubr.f32.gmra.mrb[0].mxu0 %v2095
        %v2238 = vpop.f32.mrb[0].mxu0
        %v2239 = vadd.f32 0.0, %v2238
        %v2240 = vpop.f32.mrb[0].mxu0
        %2241 = vdwg.mxu0
        %v2242 = vadd.f32 %v2075, %v2164
        %v2243 = vadd.f32 %v2076, %v2169
        %v2244 = vadd.f32 %v2077, %v2174
        %v2245 = vadd.f32 %v2078, %v2179
        %v2246 = vadd.f32 %v2079, %v2184
        %v2247 = vadd.f32 %v2080, %v2189
        %v2248 = vadd.f32 %v2081, %v2194
        %v2249 = vadd.f32 %v2082, %v2199
        %v2250 = vadd.f32 %v2083, %v2204
        %v2251 = vadd.f32 %v2084, %v2209
        %v2252 = vadd.f32 %v2085, %v2214
        %v2253 = vadd.f32 %v2086, %v2219
        %v2254 = vadd.f32 %v2087, %v2224
        %v2255 = vadd.f32 %v2088, %v2229
        %v2256 = vadd.f32 %v2089, %v2234
        %v2257 = vadd.f32 %v2090, %v2239
        %s2258 = scalar_lea.vmem %s3, 80
        %v2259 = vld [vmem:[%s2258] sm:$0xff]
        %v2260 = vsel %vm544, %v532, 0
        %v2262 = vsel %vm544, %v534, 0
        %2264 = vmatprep.subr.mxu0 0.0
        %2265 = vmatpush1.msra.mxu0 %v2259
        %2266 = vmatprep.subr.mxu0 0.0
        %2267 = vmatpush1.msra.mxu0 0.0
        %2268 = vmatprep.subr.mxu0 0.0
        %2269 = vmatpush1.msra.mxu0 0.0
        %2270 = vmatprep.subr.mxu0 0.0
        %2271 = vmatpush1.msra.mxu0 0.0
        %2272 = vmatprep.subr.mxu0 0.0
        %2273 = vmatpush1.msra.mxu0 0.0
        %2274 = vmatprep.subr.mxu0 0.0
        %2275 = vmatpush1.msra.mxu0 0.0
        %2276 = vmatprep.subr.mxu0 0.0
        %2277 = vmatpush1.msra.mxu0 0.0
        %2278 = vmatprep.subr.mxu0 0.0
        %2279 = vmatpush1.msra.mxu0 0.0
        %2280 = vmatprep.subr.mxu0 0.0
        %2281 = vmatpush1.msra.mxu0 0.0
        %2282 = vmatprep.subr.mxu0 0.0
        %2283 = vmatpush1.msra.mxu0 0.0
        %2284 = vmatprep.subr.mxu0 0.0
        %2285 = vmatpush1.msra.mxu0 0.0
        %2286 = vmatprep.subr.mxu0 0.0
        %2287 = vmatpush1.msra.mxu0 0.0
        %2288 = vmatprep.subr.mxu0 0.0
        %2289 = vmatpush1.msra.mxu0 0.0
        %2290 = vmatprep.subr.mxu0 0.0
        %2291 = vmatpush1.msra.mxu0 0.0
        %2292 = vmatprep.subr.mxu0 0.0
        %2293 = vmatpush1.msra.mxu0 0.0
        %2294 = vmatprep.subr.mxu0 0.0
        %2295 = vmatpush1.msra.mxu0 0.0
        %2296 = vmatprep.subr.mxu0 0.0
        %2297 = vmatpush1.msra.mxu0 0.0
        %2298 = vmatprep.subr.mxu0 0.0
        %2299 = vmatpush1.msra.mxu0 0.0
        %2300 = vmatprep.subr.mxu0 0.0
        %2301 = vmatpush1.msra.mxu0 0.0
        %2302 = vmatprep.subr.mxu0 0.0
        %2303 = vmatpush1.msra.mxu0 0.0
        %2304 = vmatprep.subr.mxu0 0.0
        %2305 = vmatpush1.msra.mxu0 0.0
        %2306 = vmatprep.subr.mxu0 0.0
        %2307 = vmatpush1.msra.mxu0 0.0
        %2308 = vmatprep.subr.mxu0 0.0
        %2309 = vmatpush1.msra.mxu0 0.0
        %2310 = vmatprep.subr.mxu0 0.0
        %2311 = vmatpush1.msra.mxu0 0.0
        %2312 = vmatprep.subr.mxu0 0.0
        %2313 = vmatpush1.msra.mxu0 0.0
        %2314 = vmatprep.subr.mxu0 0.0
        %2315 = vmatpush1.msra.mxu0 0.0
        %2316 = vmatprep.subr.mxu0 0.0
        %2317 = vmatpush1.msra.mxu0 0.0
        %2318 = vmatprep.subr.mxu0 0.0
        %2319 = vmatpush1.msra.mxu0 0.0
        %2320 = vmatprep.subr.mxu0 0.0
        %2321 = vmatpush1.msra.mxu0 0.0
        %2322 = vmatprep.subr.mxu0 0.0
        %2323 = vmatpush1.msra.mxu0 0.0
        %2324 = vmatprep.subr.mxu0 0.0
        %2325 = vmatpush1.msra.mxu0 0.0
        %2326 = vmatprep.subr.mxu0 0.0
        %2327 = vmatpush1.msra.mxu0 0.0
        %2328 = vmatprep.mubr.f32.mxu0 0.0
        %2329 = vmatmul.mubr.f32.gmra.mrb[0].mxu0 %v553
        %v2330 = vpop.f32.mrb[0].mxu0
        %v2331 = vadd.f32 0.0, %v2330
        %v2332 = vpop.f32.mrb[0].mxu0
        %2333 = vmatprep.mubr.f32.mxu0 0.0
        %2334 = vmatmul.mubr.f32.gmra.mrb[0].mxu0 %v555
        %v2335 = vpop.f32.mrb[0].mxu0
        %v2336 = vadd.f32 0.0, %v2335
        %v2337 = vpop.f32.mrb[0].mxu0
        %2338 = vmatprep.mubr.f32.mxu0 0.0
        %2339 = vmatmul.mubr.f32.gmra.mrb[0].mxu0 %v557
        %v2340 = vpop.f32.mrb[0].mxu0
        %v2341 = vadd.f32 0.0, %v2340
        %v2342 = vpop.f32.mrb[0].mxu0
        %2343 = vmatprep.mubr.f32.mxu0 0.0
        %2344 = vmatmul.mubr.f32.gmra.mrb[0].mxu0 %v559
        %v2345 = vpop.f32.mrb[0].mxu0
        %v2346 = vadd.f32 0.0, %v2345
        %v2347 = vpop.f32.mrb[0].mxu0
        %2348 = vmatprep.mubr.f32.mxu0 0.0
        %2349 = vmatmul.mubr.f32.gmra.mrb[0].mxu0 %v561
        %v2350 = vpop.f32.mrb[0].mxu0
        %v2351 = vadd.f32 0.0, %v2350
        %v2352 = vpop.f32.mrb[0].mxu0
        %2353 = vmatprep.mubr.f32.mxu0 0.0
        %2354 = vmatmul.mubr.f32.gmra.mrb[0].mxu0 %v563
        %v2355 = vpop.f32.mrb[0].mxu0
        %v2356 = vadd.f32 0.0, %v2355
        %v2357 = vpop.f32.mrb[0].mxu0
        %2358 = vmatprep.mubr.f32.mxu0 0.0
        %2359 = vmatmul.mubr.f32.gmra.mrb[0].mxu0 %v565
        %v2360 = vpop.f32.mrb[0].mxu0
        %v2361 = vadd.f32 0.0, %v2360
        %v2362 = vpop.f32.mrb[0].mxu0
        %2363 = vmatprep.mubr.f32.mxu0 0.0
        %2364 = vmatmul.mubr.f32.gmra.mrb[0].mxu0 %v567
        %v2365 = vpop.f32.mrb[0].mxu0
        %v2366 = vadd.f32 0.0, %v2365
        %v2367 = vpop.f32.mrb[0].mxu0
        %2368 = vmatprep.mubr.f32.mxu0 0.0
        %2369 = vmatmul.mubr.f32.gmra.mrb[0].mxu0 %v569
        %v2370 = vpop.f32.mrb[0].mxu0
        %v2371 = vadd.f32 0.0, %v2370
        %v2372 = vpop.f32.mrb[0].mxu0
        %2373 = vmatprep.mubr.f32.mxu0 0.0
        %2374 = vmatmul.mubr.f32.gmra.mrb[0].mxu0 %v571
        %v2375 = vpop.f32.mrb[0].mxu0
        %v2376 = vadd.f32 0.0, %v2375
        %v2377 = vpop.f32.mrb[0].mxu0
        %2378 = vmatprep.mubr.f32.mxu0 0.0
        %2379 = vmatmul.mubr.f32.gmra.mrb[0].mxu0 %v573
        %v2380 = vpop.f32.mrb[0].mxu0
        %v2381 = vadd.f32 0.0, %v2380
        %v2382 = vpop.f32.mrb[0].mxu0
        %2383 = vmatprep.mubr.f32.mxu0 0.0
        %2384 = vmatmul.mubr.f32.gmra.mrb[0].mxu0 %v575
        %v2385 = vpop.f32.mrb[0].mxu0
        %v2386 = vadd.f32 0.0, %v2385
        %v2387 = vpop.f32.mrb[0].mxu0
        %2388 = vmatprep.mubr.f32.mxu0 0.0
        %2389 = vmatmul.mubr.f32.gmra.mrb[0].mxu0 %v1263
        %v2390 = vpop.f32.mrb[0].mxu0
        %v2391 = vadd.f32 0.0, %v2390
        %v2392 = vpop.f32.mrb[0].mxu0
        %2393 = vmatprep.mubr.f32.mxu0 0.0
        %2394 = vmatmul.mubr.f32.gmra.mrb[0].mxu0 %v1265
        %v2395 = vpop.f32.mrb[0].mxu0
        %v2396 = vadd.f32 0.0, %v2395
        %v2397 = vpop.f32.mrb[0].mxu0
        %2398 = vmatprep.mubr.f32.mxu0 0.0
        %2399 = vmatmul.mubr.f32.gmra.mrb[0].mxu0 %v2260
        %v2400 = vpop.f32.mrb[0].mxu0
        %v2401 = vadd.f32 0.0, %v2400
        %v2402 = vpop.f32.mrb[0].mxu0
        %2403 = vmatprep.mubr.f32.mxu0 0.0
        %2404 = vmatmul.mubr.f32.gmra.mrb[0].mxu0 %v2262
        %v2405 = vpop.f32.mrb[0].mxu0
        %v2406 = vadd.f32 0.0, %v2405
        %v2407 = vpop.f32.mrb[0].mxu0
        %2408 = vdwg.mxu0
        %v2409 = vadd.f32 %v2242, %v2331
        %v2410 = vadd.f32 %v2243, %v2336
        %v2411 = vadd.f32 %v2244, %v2341
        %v2412 = vadd.f32 %v2245, %v2346
        %v2413 = vadd.f32 %v2246, %v2351
        %v2414 = vadd.f32 %v2247, %v2356
        %v2415 = vadd.f32 %v2248, %v2361
        %v2416 = vadd.f32 %v2249, %v2366
        %v2417 = vadd.f32 %v2250, %v2371
        %v2418 = vadd.f32 %v2251, %v2376
        %v2419 = vadd.f32 %v2252, %v2381
        %v2420 = vadd.f32 %v2253, %v2386
        %v2421 = vadd.f32 %v2254, %v2391
        %v2422 = vadd.f32 %v2255, %v2396
        %v2423 = vadd.f32 %v2256, %v2401
        %v2424 = vadd.f32 %v2257, %v2406
        %s2425 = scalar_lea.vmem %s3, 88
        %v2426 = vld [vmem:[%s2425] sm:$0xff]
        %v2427 = vsel %vm544, %v537, 0
        %v2429 = vsel %vm544, %v539, 0
        %2431 = vmatprep.subr.mxu0 0.0
        %2432 = vmatpush1.msra.mxu0 %v2426
        %2433 = vmatprep.subr.mxu0 0.0
        %2434 = vmatpush1.msra.mxu0 0.0
        %2435 = vmatprep.subr.mxu0 0.0
        %2436 = vmatpush1.msra.mxu0 0.0
        %2437 = vmatprep.subr.mxu0 0.0
        %2438 = vmatpush1.msra.mxu0 0.0
        %2439 = vmatprep.subr.mxu0 0.0
        %2440 = vmatpush1.msra.mxu0 0.0
        %2441 = vmatprep.subr.mxu0 0.0
        %2442 = vmatpush1.msra.mxu0 0.0
        %2443 = vmatprep.subr.mxu0 0.0
        %2444 = vmatpush1.msra.mxu0 0.0
        %2445 = vmatprep.subr.mxu0 0.0
        %2446 = vmatpush1.msra.mxu0 0.0
        %2447 = vmatprep.subr.mxu0 0.0
        %2448 = vmatpush1.msra.mxu0 0.0
        %2449 = vmatprep.subr.mxu0 0.0
        %2450 = vmatpush1.msra.mxu0 0.0
        %2451 = vmatprep.subr.mxu0 0.0
        %2452 = vmatpush1.msra.mxu0 0.0
        %2453 = vmatprep.subr.mxu0 0.0
        %2454 = vmatpush1.msra.mxu0 0.0
        %2455 = vmatprep.subr.mxu0 0.0
        %2456 = vmatpush1.msra.mxu0 0.0
        %2457 = vmatprep.subr.mxu0 0.0
        %2458 = vmatpush1.msra.mxu0 0.0
        %2459 = vmatprep.subr.mxu0 0.0
        %2460 = vmatpush1.msra.mxu0 0.0
        %2461 = vmatprep.subr.mxu0 0.0
        %2462 = vmatpush1.msra.mxu0 0.0
        %2463 = vmatprep.subr.mxu0 0.0
        %2464 = vmatpush1.msra.mxu0 0.0
        %2465 = vmatprep.subr.mxu0 0.0
        %2466 = vmatpush1.msra.mxu0 0.0
        %2467 = vmatprep.subr.mxu0 0.0
        %2468 = vmatpush1.msra.mxu0 0.0
        %2469 = vmatprep.subr.mxu0 0.0
        %2470 = vmatpush1.msra.mxu0 0.0
        %2471 = vmatprep.subr.mxu0 0.0
        %2472 = vmatpush1.msra.mxu0 0.0
        %2473 = vmatprep.subr.mxu0 0.0
        %2474 = vmatpush1.msra.mxu0 0.0
        %2475 = vmatprep.subr.mxu0 0.0
        %2476 = vmatpush1.msra.mxu0 0.0
        %2477 = vmatprep.subr.mxu0 0.0
        %2478 = vmatpush1.msra.mxu0 0.0
        %2479 = vmatprep.subr.mxu0 0.0
        %2480 = vmatpush1.msra.mxu0 0.0
        %2481 = vmatprep.subr.mxu0 0.0
        %2482 = vmatpush1.msra.mxu0 0.0
        %2483 = vmatprep.subr.mxu0 0.0
        %2484 = vmatpush1.msra.mxu0 0.0
        %2485 = vmatprep.subr.mxu0 0.0
        %2486 = vmatpush1.msra.mxu0 0.0
        %2487 = vmatprep.subr.mxu0 0.0
        %2488 = vmatpush1.msra.mxu0 0.0
        %2489 = vmatprep.subr.mxu0 0.0
        %2490 = vmatpush1.msra.mxu0 0.0
        %2491 = vmatprep.subr.mxu0 0.0
        %2492 = vmatpush1.msra.mxu0 0.0
        %2493 = vmatprep.subr.mxu0 0.0
        %2494 = vmatpush1.msra.mxu0 0.0
        %2495 = vmatprep.mubr.f32.mxu0 0.0
        %2496 = vmatmul.mubr.f32.gmra.mrb[0].mxu0 %v909
        %v2497 = vpop.f32.mrb[0].mxu0
        %v2498 = vadd.f32 0.0, %v2497
        %v2499 = vpop.f32.mrb[0].mxu0
        %2500 = vmatprep.mubr.f32.mxu0 0.0
        %2501 = vmatmul.mubr.f32.gmra.mrb[0].mxu0 %v911
        %v2502 = vpop.f32.mrb[0].mxu0
        %v2503 = vadd.f32 0.0, %v2502
        %v2504 = vpop.f32.mrb[0].mxu0
        %2505 = vmatprep.mubr.f32.mxu0 0.0
        %2506 = vmatmul.mubr.f32.gmra.mrb[0].mxu0 %v913
        %v2507 = vpop.f32.mrb[0].mxu0
        %v2508 = vadd.f32 0.0, %v2507
        %v2509 = vpop.f32.mrb[0].mxu0
        %2510 = vmatprep.mubr.f32.mxu0 0.0
        %2511 = vmatmul.mubr.f32.gmra.mrb[0].mxu0 %v915
        %v2512 = vpop.f32.mrb[0].mxu0
        %v2513 = vadd.f32 0.0, %v2512
        %v2514 = vpop.f32.mrb[0].mxu0
        %2515 = vmatprep.mubr.f32.mxu0 0.0
        %2516 = vmatmul.mubr.f32.gmra.mrb[0].mxu0 %v917
        %v2517 = vpop.f32.mrb[0].mxu0
        %v2518 = vadd.f32 0.0, %v2517
        %v2519 = vpop.f32.mrb[0].mxu0
        %2520 = vmatprep.mubr.f32.mxu0 0.0
        %2521 = vmatmul.mubr.f32.gmra.mrb[0].mxu0 %v919
        %v2522 = vpop.f32.mrb[0].mxu0
        %v2523 = vadd.f32 0.0, %v2522
        %v2524 = vpop.f32.mrb[0].mxu0
        %2525 = vmatprep.mubr.f32.mxu0 0.0
        %2526 = vmatmul.mubr.f32.gmra.mrb[0].mxu0 %v921
        %v2527 = vpop.f32.mrb[0].mxu0
        %v2528 = vadd.f32 0.0, %v2527
        %v2529 = vpop.f32.mrb[0].mxu0
        %2530 = vmatprep.mubr.f32.mxu0 0.0
        %2531 = vmatmul.mubr.f32.gmra.mrb[0].mxu0 %v923
        %v2532 = vpop.f32.mrb[0].mxu0
        %v2533 = vadd.f32 0.0, %v2532
        %v2534 = vpop.f32.mrb[0].mxu0
        %2535 = vmatprep.mubr.f32.mxu0 0.0
        %2536 = vmatmul.mubr.f32.gmra.mrb[0].mxu0 %v925
        %v2537 = vpop.f32.mrb[0].mxu0
        %v2538 = vadd.f32 0.0, %v2537
        %v2539 = vpop.f32.mrb[0].mxu0
        %2540 = vmatprep.mubr.f32.mxu0 0.0
        %2541 = vmatmul.mubr.f32.gmra.mrb[0].mxu0 %v927
        %v2542 = vpop.f32.mrb[0].mxu0
        %v2543 = vadd.f32 0.0, %v2542
        %v2544 = vpop.f32.mrb[0].mxu0
        %2545 = vmatprep.mubr.f32.mxu0 0.0
        %2546 = vmatmul.mubr.f32.gmra.mrb[0].mxu0 %v929
        %v2547 = vpop.f32.mrb[0].mxu0
        %v2548 = vadd.f32 0.0, %v2547
        %v2549 = vpop.f32.mrb[0].mxu0
        %2550 = vmatprep.mubr.f32.mxu0 0.0
        %2551 = vmatmul.mubr.f32.gmra.mrb[0].mxu0 %v931
        %v2552 = vpop.f32.mrb[0].mxu0
        %v2553 = vadd.f32 0.0, %v2552
        %v2554 = vpop.f32.mrb[0].mxu0
        %2555 = vmatprep.mubr.f32.mxu0 0.0
        %2556 = vmatmul.mubr.f32.gmra.mrb[0].mxu0 %v1430
        %v2557 = vpop.f32.mrb[0].mxu0
        %v2558 = vadd.f32 0.0, %v2557
        %v2559 = vpop.f32.mrb[0].mxu0
        %2560 = vmatprep.mubr.f32.mxu0 0.0
        %2561 = vmatmul.mubr.f32.gmra.mrb[0].mxu0 %v1432
        %v2562 = vpop.f32.mrb[0].mxu0
        %v2563 = vadd.f32 0.0, %v2562
        %v2564 = vpop.f32.mrb[0].mxu0
        %2565 = vmatprep.mubr.f32.mxu0 0.0
        %2566 = vmatmul.mubr.f32.gmra.mrb[0].mxu0 %v2427
        %v2567 = vpop.f32.mrb[0].mxu0
        %v2568 = vadd.f32 0.0, %v2567
        %v2569 = vpop.f32.mrb[0].mxu0
        %2570 = vmatprep.mubr.f32.mxu0 0.0
        %2571 = vmatmul.mubr.f32.gmra.mrb[0].mxu0 %v2429
        %v2572 = vpop.f32.mrb[0].mxu0
        %v2573 = vadd.f32 0.0, %v2572
        %v2574 = vpop.f32.mrb[0].mxu0
        %2575 = vdwg.mxu0
        %v2576 = vadd.f32 %v2409, %v2498
        %v2577 = vadd.f32 %v2410, %v2503
        %v2578 = vadd.f32 %v2411, %v2508
        %v2579 = vadd.f32 %v2412, %v2513
        %v2580 = vadd.f32 %v2413, %v2518
        %v2581 = vadd.f32 %v2414, %v2523
        %v2582 = vadd.f32 %v2415, %v2528
        %v2583 = vadd.f32 %v2416, %v2533
        %v2584 = vadd.f32 %v2417, %v2538
        %v2585 = vadd.f32 %v2418, %v2543
        %v2586 = vadd.f32 %v2419, %v2548
        %v2587 = vadd.f32 %v2420, %v2553
        %v2588 = vadd.f32 %v2421, %v2558
        %v2589 = vadd.f32 %v2422, %v2563
        %v2590 = vadd.f32 %v2423, %v2568
        %v2591 = vadd.f32 %v2424, %v2573
        %v2592 = vadd.f32 %v2576, %v1599
        %v2593 = vadd.f32 %v2577, %v1599
        %v2594 = vadd.f32 %v2578, %v1599
        %v2595 = vadd.f32 %v2579, %v1599
        %v2596 = vadd.f32 %v2580, %v1599
        %v2597 = vadd.f32 %v2581, %v1599
        %v2598 = vadd.f32 %v2582, %v1599
        %v2599 = vadd.f32 %v2583, %v1599
        %v2600 = vadd.f32 %v2584, %v1599
        %v2601 = vadd.f32 %v2585, %v1599
        %v2602 = vadd.f32 %v2586, %v1599
        %v2603 = vadd.f32 %v2587, %v1599
        %v2604 = vadd.f32 %v2588, %v1599
        %v2605 = vadd.f32 %v2589, %v1599
        %v2606 = vadd.f32 %v2590, %v1599
        %v2607 = vadd.f32 %v2591, %v1599
        %s2608 = scalar_lea.vmem %s329, 16 [#allocation2]
        %2609 = vst.msk [vmem:[%s2608] sm:$0xff] %vm1617, %v2592
        %2610 = vst.msk [vmem:[%s2608 + $0x8] sm:$0xff] %vm1617, %v2593
        %2611 = vst.msk [vmem:[%s2608 + $0x20] sm:$0xff] %vm1617, %v2594
        %2612 = vst.msk [vmem:[%s2608 + $0x28] sm:$0xff] %vm1617, %v2595
        %2613 = vst.msk [vmem:[%s2608 + $0x40] sm:$0xff] %vm1617, %v2596
        %2614 = vst.msk [vmem:[%s2608 + $0x48] sm:$0xff] %vm1617, %v2597
        %2615 = vst.msk [vmem:[%s2608 + $0x60] sm:$0xff] %vm1617, %v2598
        %2616 = vst.msk [vmem:[%s2608 + $0x68] sm:$0xff] %vm1617, %v2599
        %2617 = vst.msk [vmem:[%s2608 + $0x80] sm:$0xff] %vm1617, %v2600
        %2618 = vst.msk [vmem:[%s2608 + $0x88] sm:$0xff] %vm1617, %v2601
        %2619 = vst.msk [vmem:[%s2608 + $0xa0] sm:$0xff] %vm1617, %v2602
        %2620 = vst.msk [vmem:[%s2608 + $0xa8] sm:$0xff] %vm1617, %v2603
        %2621 = vst.msk [vmem:[%s2608 + $0xc0] sm:$0xff] %vm1617, %v2604
        %2622 = vst.msk [vmem:[%s2608 + $0xc8] sm:$0xff] %vm1617, %v2605
        %2623 = vst.msk [vmem:[%s2608 + $0xe0] sm:$0xff] %vm1617, %v2606
        %2624 = vst.msk [vmem:[%s2608 + $0xe8] sm:$0xff] %vm1617, %v2607
        %s2625 = sand.u32 %s175, 1
        %s2626 = scalar_lea.sflag [#allocation3], %s2625
        %s2627 = sand.u32 %s175, 1
        %s2628 = smul.addr %s2627, 256
        %s2629 = scalar_lea.vmem [#allocation2], %s2628
        // Predicated region
        $region41: #{tpu_custom_call.1} parent=39 // pred_check
          %p2630 = pneg %p185
        $region42: #{tpu_custom_call.1} parent=39 // pred_check_branch
          %2632 = sbr.rel (%p2630) target = $region44
        $region43: #{tpu_custom_call.1} parent=39 // pred_region
          %s2633 = smul.u32 8, %s24
          %s2635 = ssub.s32 4096, 4096
          %2636 = vsyncadd %s2626, %s2635
          %s2637 = smul.addr %s2633, 4
          %s2638 = smul.addr %s23, 64
          %s2639 = sadd.s32 %s2637, %s2638
          %s2640 = smul.addr %s2639, 128
          %s2641 = scalar_lea.hbm %s5, %s2640
          %s2642 = sshll.u32 %s2629, 4
          %s2643 = int_to_ptr.vmem [resolvable:$true] %s2642
          %2648 = dma.vmem_to_hbm [thread:$0]  %s2643, 4096, %s2641, %s2626, 128, 128, 8
        $region44: #{tpu_custom_call.1} parent=39 // pred_fallthru
          _
      $region40: #{tpu_custom_call.1} parent=5 // pred_fallthru
        _
      %p2649 = scmp.le.s32.totalorder 2, %s14
      // Predicated region
      $region45: #{tpu_custom_call.1} parent=5 // pred_check
        %p2650 = pneg %p2649
      $region46: #{tpu_custom_call.1} parent=5 // pred_check_branch
        %2652 = sbr.rel (%p2650) target = $region48
      $region47: #{tpu_custom_call.1} parent=5 // pred_region
        %s2653 = ssub.s32 %s14, 2
        // Predicated region
        $region49: #{tpu_custom_call.1} parent=47 // pred_check
          %p2654 = pneg %p191
        $region50: #{tpu_custom_call.1} parent=47 // pred_check_branch
          %2656 = sbr.rel (%p2654) target = $region52
        $region51: #{tpu_custom_call.1} parent=47 // pred_region
          %s2657 = sand.u32 %s176, 1
          %s2658 = scalar_lea.sflag [#allocation3], %s2657
          %s2659 = sand.u32 %s176, 1
          %s2660 = smul.addr %s2659, 256
          %s2661 = scalar_lea.vmem [#allocation2], %s2660
          %2662 = dma.done %s2658, 4096
        $region52: #{tpu_custom_call.1} parent=47 // pred_fallthru
          _
      $region48: #{tpu_custom_call.1} parent=5 // pred_fallthru
        _
    $region6: #{tpu_custom_call.1} parent=1 // loop_footer
      %s18 = sadd.s32 1, %s14
    $region7: #{tpu_custom_call.1} parent=1 // loop_footer_branch
      %13 = sbr.rel target = $region3
    $region8: #{tpu_custom_call.1} parent=1 // loop_exit
      _
    %2663 = vsyncpa [#allocation3], 1
    %s2664 = scalar_lea.sflag [#allocation3], 1
    %2665 = vsyncpa %s2664, 1

</llo_original>
